<compile_context>
chip_gen: v6e
topology: v6e:2x2x1
jax: 0.10.0
libtpu: 0.0.40
codegen_flags: <defaults>
</compile_context>

<pallas_src>
import functools

import jax
import jax.numpy as jnp
from jax import lax
from jax.experimental import pallas as pl
from jax.experimental.pallas import tpu as pltpu


def _round_up(n, m):
    return ((n + m - 1) // m) * m


def _pick_chunk(S, target):
    """Largest divisor of S that is <= target (Gx chunk length)."""
    c = max(1, min(S, target))
    while S % c:
        c -= 1
    return c


def _tpu_generation_info():
    """(tensorcores_per_chip, vmem_capacity_bytes) with conservative fallbacks."""
    try:
        kind = jax.devices()[0].device_kind.lower()
    except Exception:
        kind = ""
    cores = 2 if "7" in kind else 1            # v7x: 2 TCs/chip; v2-v6: 1 TC
    try:
        vmem_cap = int(pltpu.get_tpu_info().vmem_capacity_bytes)
    except Exception:
        vmem_cap = (64 if cores == 2 else 128) * 1024 * 1024
    return cores, vmem_cap


def _make_gru_kernel(S, chunk, Hp, unroll):
    n_chunks = S // chunk
    H2 = 2 * Hp
    H3 = 3 * Hp

    def kernel(emb_ref, h0_ref, wih_ref, whh_ref, bx_ref, bhn_ref,
               out_ref, hout_ref, h_scr, gx_scr):
        # NOTE(correctness): the inter-layer reuse below relies on out_ref's
        # block index being constant along the layer grid axis AND the layer
        # axis being the innermost, "arbitrary" axis, so the output slab stays
        # resident in VMEM and still holds layer l-1's sequence when layer l
        # starts.  Do not reorder the grid or mark the layer axis "parallel".
        l = pl.program_id(1)
        bb = h_scr.shape[0]

        # Layer 0 consumes the bf16-embedded tokens; deeper layers consume
        # layer l-1's outputs already resident in out_ref (same block index
        # across the layer axis; output blocks are never read from HBM, so
        # input_output_aliases cannot replace this one-time seed copy).
        @pl.when(l == 0)
        def _():
            out_ref[...] = emb_ref[...]

        def project_chunk(c, slot):
            # Input-side projection for timesteps [c*chunk, (c+1)*chunk):
            #   Gx = X @ [W_ir | W_iz | W_in] + (b_ih + [b_hr | b_hz | 0])
            # One lane-dense bf16 MXU matmul; cached in a bf16 chunk scratch.
            x = out_ref[pl.ds(c * chunk, chunk)]               # (chunk, bb, Hp) bf16
            g = jnp.dot(x.reshape(chunk * bb, Hp), wih_ref[0],
                        preferred_element_type=jnp.float32)
            g = (g + bx_ref[0]).astype(jnp.bfloat16)
            gx_scr[pl.ds(slot * chunk, chunk)] = g.reshape(chunk, bb, H3)

        # Initial hidden state for this layer + first Gx chunk.
        h_scr[...] = h0_ref[0]                                 # (bb, Hp) f32
        project_chunk(0, 0)

        # Loop invariants hoisted out of the timestep loop (JAX does not CSE
        # broadcast_in_dim, so this would otherwise be re-emitted per step).
        bhn = jnp.broadcast_to(bhn_ref[0], (bb, Hp))           # n-gate hidden bias

        def chunk_body(c, carry):
            slot = c % 2
            # Issue the next chunk's projection up front: its MXU work sits off
            # the latency-bound recurrence chain below, and the chunked scratch
            # keeps VMEM at 2 chunks instead of a full (S, bb, 3Hp) slab.
            @pl.when(c + 1 < n_chunks)
            def _():
                project_chunk(c + 1, 1 - slot)

            base = slot * chunk

            def step(ti, carry2):
                h = h_scr[...]                                 # (bb, Hp) f32
                # Single fused recurrent matmul: (bb, Hp) @ (Hp, 3Hp) -> (bb, 3Hp)
                gh = jnp.dot(h.astype(jnp.bfloat16), whh_ref[0],
                             preferred_element_type=jnp.float32)
                gx_t = gx_scr[base + ti]                       # (bb, 3Hp) bf16
                # r and z share one sigmoid on the contiguous [0:2H) lane slice.
                rz = jax.nn.sigmoid(gx_t[:, :H2] + gh[:, :H2])
                r = rz[:, :Hp]
                z = rz[:, Hp:H2]
                n = jnp.tanh(gx_t[:, H2:] + r * (gh[:, H2:] + bhn))
                h_new = (1.0 - z) * n + z * h
                h_scr[...] = h_new
                out_ref[c * chunk + ti] = h_new.astype(out_ref.dtype)
                return carry2

            lax.fori_loop(0, chunk, step, 0, unroll=unroll)
            return carry

        lax.fori_loop(0, n_chunks, chunk_body, 0)

        hout_ref[0] = h_scr[...]

    return kernel


@functools.partial(jax.jit, static_argnames=("gx_chunk",))
def encoder_rnn_forward(tokens, h0, emb_table, w_ih, w_hh, b_ih, b_hh, *,
                        gx_chunk=None):
    S, B = tokens.shape
    L, _, H = h0.shape

    # bf16 activation slabs pack 16 rows per sublane group; lanes pack to 128.
    Bp = _round_up(B, 16)
    Hp = _round_up(H, 128)
    H3 = 3 * Hp

    cores, vmem_cap = _tpu_generation_info()

    # Batch-tile split only when the chip really has 2 TensorCores (v7x); on
    # single-TC v5e/v6e a split just duplicates weight DMA + serial recurrences.
    if cores >= 2 and Bp % 32 == 0:
        bb = Bp // 2
    else:
        bb = Bp
    n_bblk = Bp // bb
    # TODO(synk): mask (or size bb toward B) when batch padding is heavy --
    # padded rows currently run the full GRU math and are sliced off at the end.

    chunk = _pick_chunk(S, 16 if gx_chunk is None else gx_chunk)

    # Unroll tuned to the per-step live gate tensors (bb, 3Hp) in f32.
    gate_bytes = bb * H3 * 4
    unroll = 4 if gate_bytes <= 96 * 1024 else (2 if gate_bytes <= 512 * 1024 else 1)

    # ---- glue: embedding gather + zero padding + gate fusion (plain JAX) ----
    emb_p = jnp.pad(emb_table, ((0, 0), (0, Hp - H)))
    tok_p = jnp.pad(tokens, ((0, 0), (0, Bp - B)))           # padded rows use token 0; discarded
    embedded = jnp.take(emb_p, tok_p, axis=0).astype(jnp.bfloat16)   # (S, Bp, Hp)

    h0_p = jnp.pad(h0, ((0, 0), (0, Bp - B), (0, Hp - H)))   # (L, Bp, Hp) f32

    def fuse_w(w):   # (L, 3, H, H) -> (L, Hp, 3Hp), bf16 for the MXU
        wp = jnp.pad(w, ((0, 0), (0, 0), (0, Hp - H), (0, Hp - H)))
        return jnp.concatenate([wp[:, 0], wp[:, 1], wp[:, 2]],
                               axis=-1).astype(jnp.bfloat16)

    wih_f = fuse_w(w_ih)                                      # (L, Hp, 3Hp) bf16
    whh_f = fuse_w(w_hh)

    bih_p = jnp.pad(b_ih, ((0, 0), (0, 0), (0, Hp - H)))      # (L, 3, Hp)
    bhh_p = jnp.pad(b_hh, ((0, 0), (0, 0), (0, Hp - H)))
    # Fold r/z hidden biases into the hoisted Gx bias; b_hn must stay separate
    # because of the r * (h @ W_hn + b_hn) term.
    bx = jnp.concatenate([bih_p[:, 0] + bhh_p[:, 0],
                          bih_p[:, 1] + bhh_p[:, 1],
                          bih_p[:, 2]], axis=-1)[:, None, :]     # (L, 1, 3Hp) f32
    bhn = bhh_p[:, 2][:, None, :]                                # (L, 1, Hp) f32

    kernel = _make_gru_kernel(S, chunk, Hp, unroll)

    grid_spec = pltpu.PrefetchScalarGridSpec(
        num_scalar_prefetch=0,
        grid=(n_bblk, L),                 # layer axis MUST stay innermost / arbitrary
        in_specs=[
            pl.BlockSpec((S, bb, Hp), lambda b, l: (0, b, 0)),   # embedded seq (bf16)
            pl.BlockSpec((1, bb, Hp), lambda b, l: (l, b, 0)),   # h0 for layer l
            pl.BlockSpec((1, Hp, H3), lambda b, l: (l, 0, 0)),   # fused W_ih[l] (bf16)
            pl.BlockSpec((1, Hp, H3), lambda b, l: (l, 0, 0)),   # fused W_hh[l] (bf16)
            pl.BlockSpec((1, 1, H3), lambda b, l: (l, 0, 0)),    # folded x-side bias
            pl.BlockSpec((1, 1, Hp), lambda b, l: (l, 0, 0)),    # n-gate hidden bias
        ],
        out_specs=(
            pl.BlockSpec((S, bb, Hp), lambda b, l: (0, b, 0)),   # seq out (bf16), resident across layers
            pl.BlockSpec((1, bb, Hp), lambda b, l: (l, b, 0)),   # final hidden per layer (f32)
        ),
        scratch_shapes=[
            pltpu.VMEM((bb, Hp), jnp.float32),                   # running hidden state
            pltpu.VMEM((2 * chunk, bb, H3), jnp.bfloat16),       # double-buffered Gx chunks
        ],
    )

    vmem_limit = max(32 * 1024 * 1024,
                     min(int(vmem_cap * 0.8), 112 * 1024 * 1024))

    out_p, hout_p = pl.pallas_call(
        kernel,
        out_shape=(jax.ShapeDtypeStruct((S, Bp, Hp), jnp.bfloat16),
                   jax.ShapeDtypeStruct((L, Bp, Hp), jnp.float32)),
        grid_spec=grid_spec,
        compiler_params=pltpu.CompilerParams(
            dimension_semantics=("parallel", "arbitrary"),  # batch tiles ∥, layers serial
            vmem_limit_bytes=vmem_limit,
        ),
    )(embedded, h0_p, wih_f, whh_f, bx, bhn)

    # Strip batch / hidden padding; upcast the bf16 output slab for callers.
    return out_p[:, :B, :H].astype(jnp.float32), hout_p[:, :B, :H]


def reference_forward(tokens, h0, emb_table, w_ih, w_hh, b_ih, b_hh,
                      kernel_precision=False):
    """Pure-JAX reference matching torch.nn.GRU semantics.

    kernel_precision=True mimics the kernel's mixed precision: bf16 matmul
    operands with f32 accumulation, input-side gate pre-activations rounded to
    bf16 (they live in a bf16 VMEM scratch), and per-timestep sequence outputs
    rounded to bf16 (the output slab is bf16). Gate math and the recurrent
    state stay f32, as in the kernel.
    """
    if kernel_precision:
        def mm(a, b):
            return jnp.dot(a.astype(jnp.bfloat16), b.astype(jnp.bfloat16),
                           preferred_element_type=jnp.float32)
        def rnd(v):
            return v.astype(jnp.bfloat16).astype(jnp.float32)
    else:
        def mm(a, b):
            return jnp.dot(a, b, preferred_element_type=jnp.float32)
        def rnd(v):
            return v

    embedded = jnp.take(emb_table, tokens, axis=0)   # (S, B, H)
    L = h0.shape[0]
    x_seq = embedded
    h_finals = []
    for l in range(L):
        h = h0[l]
        outs = []
        for t in range(x_seq.shape[0]):
            x = x_seq[t]
            gx_r = rnd(mm(x, w_ih[l, 0]) + (b_ih[l, 0] + b_hh[l, 0]))
            gx_z = rnd(mm(x, w_ih[l, 1]) + (b_ih[l, 1] + b_hh[l, 1]))
            gx_n = rnd(mm(x, w_ih[l, 2]) + b_ih[l, 2])
            r = jax.nn.sigmoid(gx_r + mm(h, w_hh[l, 0]))
            z = jax.nn.sigmoid(gx_z + mm(h, w_hh[l, 1]))
            n = jnp.tanh(gx_n + r * (mm(h, w_hh[l, 2]) + b_hh[l, 2]))
            h = (1.0 - z) * n + z * h
            outs.append(rnd(h))
        x_seq = jnp.stack(outs, axis=0)
        h_finals.append(h)
    return x_seq, jnp.stack(h_finals, axis=0)


if __name__ == "__main__":
    SRC_VOCAB = 20
    HIDDEN = 32
    NUM_LAYERS = 2
    SEQ_LEN = 8
    BATCH = 4

    key = jax.random.PRNGKey(0)
    k_tok, k_h0, k_emb, k_wih, k_whh, k_bih, k_bhh = jax.random.split(key, 7)

    bound = 1.0 / jnp.sqrt(HIDDEN)   # PyTorch default uniform init range

    tokens = jax.random.randint(k_tok, (SEQ_LEN, BATCH), 0, SRC_VOCAB, dtype=jnp.int32)
    h0 = jax.random.uniform(k_h0, (NUM_LAYERS, BATCH, HIDDEN), jnp.float32, -1.0, 1.0)
    emb_table = jax.random.normal(k_emb, (SRC_VOCAB, HIDDEN), jnp.float32)
    # Weights per layer / per gate (r, z, n), oriented (H_in, H_out) so x @ W.
    w_ih = jax.random.uniform(k_wih, (NUM_LAYERS, 3, HIDDEN, HIDDEN), jnp.float32, -bound, bound)
    w_hh = jax.random.uniform(k_whh, (NUM_LAYERS, 3, HIDDEN, HIDDEN), jnp.float32, -bound, bound)
    b_ih = jax.random.uniform(k_bih, (NUM_LAYERS, 3, HIDDEN), jnp.float32, -bound, bound)
    b_hh = jax.random.uniform(k_bhh, (NUM_LAYERS, 3, HIDDEN), jnp.float32, -bound, bound)

    # gx_chunk=4 -> two Gx chunks, so the double-buffered chunk path is exercised.
    output, h_out = encoder_rnn_forward(tokens, h0, emb_table, w_ih, w_hh, b_ih, b_hh,
                                        gx_chunk=4)
    jax.block_until_ready((output, h_out))

    assert output.shape == (SEQ_LEN, BATCH, HIDDEN)
    assert h_out.shape == (NUM_LAYERS, BATCH, HIDDEN)
    assert output.dtype == jnp.float32 and h_out.dtype == jnp.float32

    # Tight check against a reference with the same mixed precision as the kernel.
    ref_mx_out, ref_mx_h = reference_forward(tokens, h0, emb_table, w_ih, w_hh, b_ih, b_hh,
                                             kernel_precision=True)
    assert jnp.allclose(output, ref_mx_out, rtol=2e-3, atol=2e-3)
    assert jnp.allclose(h_out, ref_mx_h, rtol=2e-3, atol=2e-3)

    # Looser sanity check against full-f32 torch.nn.GRU semantics.
    ref_out, ref_h = reference_forward(tokens, h0, emb_table, w_ih, w_hh, b_ih, b_hh,
                                       kernel_precision=False)
    assert jnp.allclose(output, ref_out, rtol=5e-2, atol=5e-2)
    assert jnp.allclose(h_out, ref_h, rtol=5e-2, atol=5e-2)

    print("KERNEL_OK")
</pallas_src>

<mosaic_0001>
module attributes {stable_mosaic.version = 11 : i64} {
  func.func @kernel(%arg0: i32, %arg1: i32, %arg2: memref<8x16x128xbf16, #tpu.memory_space<vmem>>, %arg3: memref<1x16x128xf32, #tpu.memory_space<vmem>>, %arg4: memref<1x128x384xbf16, #tpu.memory_space<vmem>>, %arg5: memref<1x128x384xbf16, #tpu.memory_space<vmem>>, %arg6: memref<1x1x384xf32, #tpu.memory_space<vmem>>, %arg7: memref<1x1x128xf32, #tpu.memory_space<vmem>>, %arg8: memref<8x16x128xbf16, #tpu.memory_space<vmem>>, %arg9: memref<1x16x128xf32, #tpu.memory_space<vmem>>, %arg10: memref<16x128xf32, #tpu.memory_space<vmem>>, %arg11: memref<8x16x384xbf16, #tpu.memory_space<vmem>>) attributes {dimension_semantics = [#tpu.dimension_semantics<parallel>, #tpu.dimension_semantics<arbitrary>], iteration_bounds = array<i64: 1, 2>, scalar_prefetch = 0 : i64, scratch_operands = 2 : i64, tpu.core_type = #tpu.core_type<tc>, window_params = [{transform_indices = @transform_0, window_bounds = array<i64: 8, 16, 128>}, {transform_indices = @transform_1, window_bounds = array<i64: 1, 16, 128>}, {transform_indices = @transform_2, window_bounds = array<i64: 1, 128, 384>}, {transform_indices = @transform_3, window_bounds = array<i64: 1, 128, 384>}, {transform_indices = @transform_4, window_bounds = array<i64: 1, 1, 384>}, {transform_indices = @transform_5, window_bounds = array<i64: 1, 1, 128>}, {transform_indices = @transform_6, window_bounds = array<i64: 8, 16, 128>}, {transform_indices = @transform_7, window_bounds = array<i64: 1, 16, 128>}]} {
    %c0_i32 = arith.constant 0 : i32
    %0 = arith.cmpi eq, %arg1, %c0_i32 : i32
    %1 = arith.extui %0 : i1 to i32
    %c0_i32_0 = arith.constant 0 : i32
    %2 = arith.cmpi ne, %1, %c0_i32_0 : i32
    scf.if %2 {
      %c0_27 = arith.constant 0 : index
      %c0_28 = arith.constant 0 : index
      %c0_29 = arith.constant 0 : index
      %27 = vector.load %arg2[%c0_27, %c0_28, %c0_29] : memref<8x16x128xbf16, #tpu.memory_space<vmem>>, vector<8x16x128xbf16>
      %c0_30 = arith.constant 0 : index
      %c0_31 = arith.constant 0 : index
      %c0_32 = arith.constant 0 : index
      %28 = vector.load %arg8[%c0_30, %c0_31, %c0_32] : memref<8x16x128xbf16, #tpu.memory_space<vmem>>, vector<8x16x128xbf16>
      tpu.vector_store %arg8[%c0_30, %c0_31, %c0_32], %27 {strides = array<i32>} : memref<8x16x128xbf16, #tpu.memory_space<vmem>>, vector<8x16x128xbf16>,
    } else {
    }
    %c0 = arith.constant 0 : index
    %c0_1 = arith.constant 0 : index
    %c0_2 = arith.constant 0 : index
    %3 = vector.load %arg3[%c0, %c0_1, %c0_2] : memref<1x16x128xf32, #tpu.memory_space<vmem>>, vector<1x16x128xf32>
    %4 = vector.shape_cast %3 : vector<1x16x128xf32> to vector<16x128xf32>
    %c0_3 = arith.constant 0 : index
    %c0_4 = arith.constant 0 : index
    %5 = vector.load %arg10[%c0_3, %c0_4] : memref<16x128xf32, #tpu.memory_space<vmem>>, vector<16x128xf32>
    tpu.vector_store %arg10[%c0_3, %c0_4], %4 {strides = array<i32>} : memref<16x128xf32, #tpu.memory_space<vmem>>, vector<16x128xf32>,
    %c0_5 = arith.constant 0 : index
    %c0_6 = arith.constant 0 : index
    %c0_7 = arith.constant 0 : index
    %6 = vector.load %arg8[%c0_5, %c0_6, %c0_7] : memref<8x16x128xbf16, #tpu.memory_space<vmem>>, vector<4x16x128xbf16>
    %7 = vector.shape_cast %6 : vector<4x16x128xbf16> to vector<64x128xbf16>
    %c0_8 = arith.constant 0 : index
    %c0_9 = arith.constant 0 : index
    %c0_10 = arith.constant 0 : index
    %8 = vector.load %arg4[%c0_8, %c0_9, %c0_10] : memref<1x128x384xbf16, #tpu.memory_space<vmem>>, vector<1x128x384xbf16>
    %9 = vector.shape_cast %8 : vector<1x128x384xbf16> to vector<128x384xbf16>
    %cst = arith.constant dense<0.000000e+00> : vector<64x384xf32>
    %10 = tpu.matmul %7, %9, %cst {dimension_numbers = #tpu.dot_dimension_numbers<[1], [0], [0], [1], [0, 0, 1, 1], [], []>} : vector<64x128xbf16>, vector<128x384xbf16>, vector<64x384xf32> -> vector<64x384xf32>
    %c0_11 = arith.constant 0 : index
    %c0_12 = arith.constant 0 : index
    %c0_13 = arith.constant 0 : index
    %11 = vector.load %arg6[%c0_11, %c0_12, %c0_13] : memref<1x1x384xf32, #tpu.memory_space<vmem>>, vector<1x1x384xf32>
    %12 = vector.shape_cast %11 : vector<1x1x384xf32> to vector<1x384xf32>
    %13 = vector.broadcast %12 : vector<1x384xf32> to vector<64x384xf32>
    %14 = arith.addf %10, %13 : vector<64x384xf32>
    %15 = arith.truncf %14 : vector<64x384xf32> to vector<64x384xbf16>
    %16 = vector.shape_cast %15 : vector<64x384xbf16> to vector<4x16x384xbf16>
    %c0_14 = arith.constant 0 : index
    %c0_15 = arith.constant 0 : index
    %c0_16 = arith.constant 0 : index
    %17 = vector.load %arg11[%c0_14, %c0_15, %c0_16] : memref<8x16x384xbf16, #tpu.memory_space<vmem>>, vector<4x16x384xbf16>
    tpu.vector_store %arg11[%c0_14, %c0_15, %c0_16], %16 {strides = array<i32>} : memref<8x16x384xbf16, #tpu.memory_space<vmem>>, vector<4x16x384xbf16>,
    %c0_17 = arith.constant 0 : index
    %c0_18 = arith.constant 0 : index
    %c0_19 = arith.constant 0 : index
    %18 = vector.load %arg7[%c0_17, %c0_18, %c0_19] : memref<1x1x128xf32, #tpu.memory_space<vmem>>, vector<1x1x128xf32>
    %19 = vector.shape_cast %18 : vector<1x1x128xf32> to vector<1x128xf32>
    %20 = vector.shape_cast %19 : vector<1x128xf32> to vector<1x128xf32>
    %21 = vector.broadcast %20 : vector<1x128xf32> to vector<16x128xf32>
    %c0_i32_20 = arith.constant 0 : i32
    %c2_i32 = arith.constant 2 : i32
    %22 = arith.addi %c0_i32_20, %c2_i32 : i32
    %c1_i32 = arith.constant 1 : i32
    scf.for %arg12 = %c0_i32_20 to %22 step %c1_i32  : i32 {
      %c2_i32_27 = arith.constant 2 : i32
      %c0_i32_28 = arith.constant 0 : i32
      %27 = arith.cmpi eq, %c2_i32_27, %c0_i32_28 : i32
      %c1_i32_29 = arith.constant 1 : i32
      %28 = arith.select %27, %c1_i32_29, %c2_i32_27 : i32
      %29 = arith.remsi %arg12, %28 : i32
      %c0_i32_30 = arith.constant 0 : i32
      %30 = arith.cmpi ne, %29, %c0_i32_30 : i32
      %c0_i32_31 = arith.constant 0 : i32
      %31 = arith.cmpi slt, %29, %c0_i32_31 : i32
      %c0_i32_32 = arith.constant 0 : i32
      %32 = arith.cmpi slt, %28, %c0_i32_32 : i32
      %33 = arith.xori %31, %32 : i1
      %34 = arith.andi %33, %30 : i1
      %35 = arith.addi %29, %28 : i32
      %36 = arith.select %34, %35, %29 : i32
      %c1_i32_33 = arith.constant 1 : i32
      %37 = arith.addi %arg12, %c1_i32_33 : i32
      %c2_i32_34 = arith.constant 2 : i32
      %38 = arith.cmpi slt, %37, %c2_i32_34 : i32
      %39 = arith.extui %38 : i1 to i32
      %c0_i32_35 = arith.constant 0 : i32
      %40 = arith.cmpi ne, %39, %c0_i32_35 : i32
      scf.if %40 {
        %c1_i32_100 = arith.constant 1 : i32
        %202 = arith.addi %arg12, %c1_i32_100 : i32
        %c1_i32_101 = arith.constant 1 : i32
        %203 = arith.subi %c1_i32_101, %36 : i32
        %c4_i32_102 = arith.constant 4 : i32
        %204 = arith.muli %202, %c4_i32_102 : i32
        %205 = arith.index_cast %204 : i32 to index
        %c0_103 = arith.constant 0 : index
        %c0_104 = arith.constant 0 : index
        %206 = vector.load %arg8[%205, %c0_103, %c0_104] : memref<8x16x128xbf16, #tpu.memory_space<vmem>>, vector<4x16x128xbf16>
        %207 = vector.shape_cast %206 : vector<4x16x128xbf16> to vector<64x128xbf16>
        %c0_105 = arith.constant 0 : index
        %c0_106 = arith.constant 0 : index
        %c0_107 = arith.constant 0 : index
        %208 = vector.load %arg4[%c0_105, %c0_106, %c0_107] : memref<1x128x384xbf16, #tpu.memory_space<vmem>>, vector<1x128x384xbf16>
        %209 = vector.shape_cast %208 : vector<1x128x384xbf16> to vector<128x384xbf16>
        %cst_108 = arith.constant dense<0.000000e+00> : vector<64x384xf32>
        %210 = tpu.matmul %207, %209, %cst_108 {dimension_numbers = #tpu.dot_dimension_numbers<[1], [0], [0], [1], [0, 0, 1, 1], [], []>} : vector<64x128xbf16>, vector<128x384xbf16>, vector<64x384xf32> -> vector<64x384xf32>
        %c0_109 = arith.constant 0 : index
        %c0_110 = arith.constant 0 : index
        %c0_111 = arith.constant 0 : index
        %211 = vector.load %arg6[%c0_109, %c0_110, %c0_111] : memref<1x1x384xf32, #tpu.memory_space<vmem>>, vector<1x1x384xf32>
        %212 = vector.shape_cast %211 : vector<1x1x384xf32> to vector<1x384xf32>
        %213 = vector.broadcast %212 : vector<1x384xf32> to vector<64x384xf32>
        %214 = arith.addf %210, %213 : vector<64x384xf32>
        %215 = arith.truncf %214 : vector<64x384xf32> to vector<64x384xbf16>
        %216 = vector.shape_cast %215 : vector<64x384xbf16> to vector<4x16x384xbf16>
        %c4_i32_112 = arith.constant 4 : i32
        %217 = arith.muli %203, %c4_i32_112 : i32
        %218 = arith.index_cast %217 : i32 to index
        %c0_113 = arith.constant 0 : index
        %c0_114 = arith.constant 0 : index
        %219 = vector.load %arg11[%218, %c0_113, %c0_114] : memref<8x16x384xbf16, #tpu.memory_space<vmem>>, vector<4x16x384xbf16>
        tpu.vector_store %arg11[%218, %c0_113, %c0_114], %216 {strides = array<i32>} : memref<8x16x384xbf16, #tpu.memory_space<vmem>>, vector<4x16x384xbf16>,
      } else {
      }
      %c4_i32 = arith.constant 4 : i32
      %41 = arith.muli %36, %c4_i32 : i32
      %c0_i32_36 = arith.constant 0 : i32
      %c0_37 = arith.constant 0 : index
      %c0_38 = arith.constant 0 : index
      %42 = vector.load %arg10[%c0_37, %c0_38] : memref<16x128xf32, #tpu.memory_space<vmem>>, vector<16x128xf32>
      %43 = arith.truncf %42 : vector<16x128xf32> to vector<16x128xbf16>
      %c0_39 = arith.constant 0 : index
      %c0_40 = arith.constant 0 : index
      %c0_41 = arith.constant 0 : index
      %44 = vector.load %arg5[%c0_39, %c0_40, %c0_41] : memref<1x128x384xbf16, #tpu.memory_space<vmem>>, vector<1x128x384xbf16>
      %45 = vector.shape_cast %44 : vector<1x128x384xbf16> to vector<128x384xbf16>
      %cst_42 = arith.constant dense<0.000000e+00> : vector<16x384xf32>
      %46 = tpu.matmul %43, %45, %cst_42 {dimension_numbers = #tpu.dot_dimension_numbers<[1], [0], [0], [1], [0, 0, 1, 1], [], []>} : vector<16x128xbf16>, vector<128x384xbf16>, vector<16x384xf32> -> vector<16x384xf32>
      %47 = arith.addi %41, %c0_i32_36 : i32
      %48 = arith.index_cast %47 : i32 to index
      %c0_43 = arith.constant 0 : index
      %c0_44 = arith.constant 0 : index
      %49 = vector.load %arg11[%48, %c0_43, %c0_44] : memref<8x16x384xbf16, #tpu.memory_space<vmem>>, vector<1x16x384xbf16>
      %50 = vector.shape_cast %49 : vector<1x16x384xbf16> to vector<16x384xbf16>
      %51 = vector.extract_strided_slice %50 {offsets = [0, 0], sizes = [16, 256], strides = [1, 1]} : vector<16x384xbf16> to vector<16x256xbf16>
      %52 = vector.extract_strided_slice %46 {offsets = [0, 0], sizes = [16, 256], strides = [1, 1]} : vector<16x384xf32> to vector<16x256xf32>
      %53 = arith.extf %51 : vector<16x256xbf16> to vector<16x256xf32>
      %54 = arith.addf %53, %52 : vector<16x256xf32>
      %55 = arith.negf %54 : vector<16x256xf32>
      %56 = math.exp %55 : vector<16x256xf32>
      %cst_45 = arith.constant 1.000000e+00 : f32
      %57 = vector.broadcast %cst_45 : f32 to vector<16x256xf32>
      %58 = arith.addf %57, %56 : vector<16x256xf32>
      %59 = arith.divf %57, %58 : vector<16x256xf32>
      %60 = vector.extract_strided_slice %59 {offsets = [0, 0], sizes = [16, 128], strides = [1, 1]} : vector<16x256xf32> to vector<16x128xf32>
      %61 = vector.extract_strided_slice %59 {offsets = [0, 128], sizes = [16, 128], strides = [1, 1]} : vector<16x256xf32> to vector<16x128xf32>
      %62 = vector.extract_strided_slice %50 {offsets = [0, 256], sizes = [16, 128], strides = [1, 1]} : vector<16x384xbf16> to vector<16x128xbf16>
      %63 = vector.extract_strided_slice %46 {offsets = [0, 256], sizes = [16, 128], strides = [1, 1]} : vector<16x384xf32> to vector<16x128xf32>
      %64 = arith.addf %63, %21 : vector<16x128xf32>
      %65 = arith.mulf %60, %64 : vector<16x128xf32>
      %66 = arith.extf %62 : vector<16x128xbf16> to vector<16x128xf32>
      %67 = arith.addf %66, %65 : vector<16x128xf32>
      %68 = math.tanh %67 : vector<16x128xf32>
      %cst_46 = arith.constant 1.000000e+00 : f32
      %69 = vector.broadcast %cst_46 : f32 to vector<16x128xf32>
      %70 = arith.subf %69, %61 : vector<16x128xf32>
      %71 = arith.mulf %70, %68 : vector<16x128xf32>
      %72 = arith.mulf %61, %42 : vector<16x128xf32>
      %73 = arith.addf %71, %72 : vector<16x128xf32>
      %c0_47 = arith.constant 0 : index
      %c0_48 = arith.constant 0 : index
      %74 = vector.load %arg10[%c0_47, %c0_48] : memref<16x128xf32, #tpu.memory_space<vmem>>, vector<16x128xf32>
      tpu.vector_store %arg10[%c0_47, %c0_48], %73 {strides = array<i32>} : memref<16x128xf32, #tpu.memory_space<vmem>>, vector<16x128xf32>,
      %75 = arith.truncf %73 : vector<16x128xf32> to vector<16x128xbf16>
      %c4_i32_49 = arith.constant 4 : i32
      %76 = arith.muli %arg12, %c4_i32_49 : i32
      %77 = arith.addi %76, %c0_i32_36 : i32
      %78 = arith.index_cast %77 : i32 to index
      %c0_50 = arith.constant 0 : index
      %c0_51 = arith.constant 0 : index
      %79 = vector.load %arg8[%78, %c0_50, %c0_51] : memref<8x16x128xbf16, #tpu.memory_space<vmem>>, vector<1x16x128xbf16>
      %80 = vector.shape_cast %79 : vector<1x16x128xbf16> to vector<16x128xbf16>
      %81 = vector.shape_cast %75 : vector<16x128xbf16> to vector<1x16x128xbf16>
      tpu.vector_store %arg8[%78, %c0_50, %c0_51], %81 {strides = array<i32>} : memref<8x16x128xbf16, #tpu.memory_space<vmem>>, vector<1x16x128xbf16>,
      %c1_i32_52 = arith.constant 1 : i32
      %c0_53 = arith.constant 0 : index
      %c0_54 = arith.constant 0 : index
      %82 = vector.load %arg10[%c0_53, %c0_54] : memref<16x128xf32, #tpu.memory_space<vmem>>, vector<16x128xf32>
      %83 = arith.truncf %82 : vector<16x128xf32> to vector<16x128xbf16>
      %c0_55 = arith.constant 0 : index
      %c0_56 = arith.constant 0 : index
      %c0_57 = arith.constant 0 : index
      %84 = vector.load %arg5[%c0_55, %c0_56, %c0_57] : memref<1x128x384xbf16, #tpu.memory_space<vmem>>, vector<1x128x384xbf16>
      %85 = vector.shape_cast %84 : vector<1x128x384xbf16> to vector<128x384xbf16>
      %cst_58 = arith.constant dense<0.000000e+00> : vector<16x384xf32>
      %86 = tpu.matmul %83, %85, %cst_58 {dimension_numbers = #tpu.dot_dimension_numbers<[1], [0], [0], [1], [0, 0, 1, 1], [], []>} : vector<16x128xbf16>, vector<128x384xbf16>, vector<16x384xf32> -> vector<16x384xf32>
      %87 = arith.addi %41, %c1_i32_52 : i32
      %88 = arith.index_cast %87 : i32 to index
      %c0_59 = arith.constant 0 : index
      %c0_60 = arith.constant 0 : index
      %89 = vector.load %arg11[%88, %c0_59, %c0_60] : memref<8x16x384xbf16, #tpu.memory_space<vmem>>, vector<1x16x384xbf16>
      %90 = vector.shape_cast %89 : vector<1x16x384xbf16> to vector<16x384xbf16>
      %91 = vector.extract_strided_slice %90 {offsets = [0, 0], sizes = [16, 256], strides = [1, 1]} : vector<16x384xbf16> to vector<16x256xbf16>
      %92 = vector.extract_strided_slice %86 {offsets = [0, 0], sizes = [16, 256], strides = [1, 1]} : vector<16x384xf32> to vector<16x256xf32>
      %93 = arith.extf %91 : vector<16x256xbf16> to vector<16x256xf32>
      %94 = arith.addf %93, %92 : vector<16x256xf32>
      %95 = arith.negf %94 : vector<16x256xf32>
      %96 = math.exp %95 : vector<16x256xf32>
      %cst_61 = arith.constant 1.000000e+00 : f32
      %97 = vector.broadcast %cst_61 : f32 to vector<16x256xf32>
      %98 = arith.addf %97, %96 : vector<16x256xf32>
      %99 = arith.divf %97, %98 : vector<16x256xf32>
      %100 = vector.extract_strided_slice %99 {offsets = [0, 0], sizes = [16, 128], strides = [1, 1]} : vector<16x256xf32> to vector<16x128xf32>
      %101 = vector.extract_strided_slice %99 {offsets = [0, 128], sizes = [16, 128], strides = [1, 1]} : vector<16x256xf32> to vector<16x128xf32>
      %102 = vector.extract_strided_slice %90 {offsets = [0, 256], sizes = [16, 128], strides = [1, 1]} : vector<16x384xbf16> to vector<16x128xbf16>
      %103 = vector.extract_strided_slice %86 {offsets = [0, 256], sizes = [16, 128], strides = [1, 1]} : vector<16x384xf32> to vector<16x128xf32>
      %104 = arith.addf %103, %21 : vector<16x128xf32>
      %105 = arith.mulf %100, %104 : vector<16x128xf32>
      %106 = arith.extf %102 : vector<16x128xbf16> to vector<16x128xf32>
      %107 = arith.addf %106, %105 : vector<16x128xf32>
      %108 = math.tanh %107 : vector<16x128xf32>
      %cst_62 = arith.constant 1.000000e+00 : f32
      %109 = vector.broadcast %cst_62 : f32 to vector<16x128xf32>
      %110 = arith.subf %109, %101 : vector<16x128xf32>
      %111 = arith.mulf %110, %108 : vector<16x128xf32>
      %112 = arith.mulf %101, %82 : vector<16x128xf32>
      %113 = arith.addf %111, %112 : vector<16x128xf32>
      %c0_63 = arith.constant 0 : index
      %c0_64 = arith.constant 0 : index
      %114 = vector.load %arg10[%c0_63, %c0_64] : memref<16x128xf32, #tpu.memory_space<vmem>>, vector<16x128xf32>
      tpu.vector_store %arg10[%c0_63, %c0_64], %113 {strides = array<i32>} : memref<16x128xf32, #tpu.memory_space<vmem>>, vector<16x128xf32>,
      %115 = arith.truncf %113 : vector<16x128xf32> to vector<16x128xbf16>
      %c4_i32_65 = arith.constant 4 : i32
      %116 = arith.muli %arg12, %c4_i32_65 : i32
      %117 = arith.addi %116, %c1_i32_52 : i32
      %118 = arith.index_cast %117 : i32 to index
      %c0_66 = arith.constant 0 : index
      %c0_67 = arith.constant 0 : index
      %119 = vector.load %arg8[%118, %c0_66, %c0_67] : memref<8x16x128xbf16, #tpu.memory_space<vmem>>, vector<1x16x128xbf16>
      %120 = vector.shape_cast %119 : vector<1x16x128xbf16> to vector<16x128xbf16>
      %121 = vector.shape_cast %115 : vector<16x128xbf16> to vector<1x16x128xbf16>
      tpu.vector_store %arg8[%118, %c0_66, %c0_67], %121 {strides = array<i32>} : memref<8x16x128xbf16, #tpu.memory_space<vmem>>, vector<1x16x128xbf16>,
      %c2_i32_68 = arith.constant 2 : i32
      %c0_69 = arith.constant 0 : index
      %c0_70 = arith.constant 0 : index
      %122 = vector.load %arg10[%c0_69, %c0_70] : memref<16x128xf32, #tpu.memory_space<vmem>>, vector<16x128xf32>
      %123 = arith.truncf %122 : vector<16x128xf32> to vector<16x128xbf16>
      %c0_71 = arith.constant 0 : index
      %c0_72 = arith.constant 0 : index
      %c0_73 = arith.constant 0 : index
      %124 = vector.load %arg5[%c0_71, %c0_72, %c0_73] : memref<1x128x384xbf16, #tpu.memory_space<vmem>>, vector<1x128x384xbf16>
      %125 = vector.shape_cast %124 : vector<1x128x384xbf16> to vector<128x384xbf16>
      %cst_74 = arith.constant dense<0.000000e+00> : vector<16x384xf32>
      %126 = tpu.matmul %123, %125, %cst_74 {dimension_numbers = #tpu.dot_dimension_numbers<[1], [0], [0], [1], [0, 0, 1, 1], [], []>} : vector<16x128xbf16>, vector<128x384xbf16>, vector<16x384xf32> -> vector<16x384xf32>
      %127 = arith.addi %41, %c2_i32_68 : i32
      %128 = arith.index_cast %127 : i32 to index
      %c0_75 = arith.constant 0 : index
      %c0_76 = arith.constant 0 : index
      %129 = vector.load %arg11[%128, %c0_75, %c0_76] : memref<8x16x384xbf16, #tpu.memory_space<vmem>>, vector<1x16x384xbf16>
      %130 = vector.shape_cast %129 : vector<1x16x384xbf16> to vector<16x384xbf16>
      %131 = vector.extract_strided_slice %130 {offsets = [0, 0], sizes = [16, 256], strides = [1, 1]} : vector<16x384xbf16> to vector<16x256xbf16>
      %132 = vector.extract_strided_slice %126 {offsets = [0, 0], sizes = [16, 256], strides = [1, 1]} : vector<16x384xf32> to vector<16x256xf32>
      %133 = arith.extf %131 : vector<16x256xbf16> to vector<16x256xf32>
      %134 = arith.addf %133, %132 : vector<16x256xf32>
      %135 = arith.negf %134 : vector<16x256xf32>
      %136 = math.exp %135 : vector<16x256xf32>
      %cst_77 = arith.constant 1.000000e+00 : f32
      %137 = vector.broadcast %cst_77 : f32 to vector<16x256xf32>
      %138 = arith.addf %137, %136 : vector<16x256xf32>
      %139 = arith.divf %137, %138 : vector<16x256xf32>
      %140 = vector.extract_strided_slice %139 {offsets = [0, 0], sizes = [16, 128], strides = [1, 1]} : vector<16x256xf32> to vector<16x128xf32>
      %141 = vector.extract_strided_slice %139 {offsets = [0, 128], sizes = [16, 128], strides = [1, 1]} : vector<16x256xf32> to vector<16x128xf32>
      %142 = vector.extract_strided_slice %130 {offsets = [0, 256], sizes = [16, 128], strides = [1, 1]} : vector<16x384xbf16> to vector<16x128xbf16>
      %143 = vector.extract_strided_slice %126 {offsets = [0, 256], sizes = [16, 128], strides = [1, 1]} : vector<16x384xf32> to vector<16x128xf32>
      %144 = arith.addf %143, %21 : vector<16x128xf32>
      %145 = arith.mulf %140, %144 : vector<16x128xf32>
      %146 = arith.extf %142 : vector<16x128xbf16> to vector<16x128xf32>
      %147 = arith.addf %146, %145 : vector<16x128xf32>
      %148 = math.tanh %147 : vector<16x128xf32>
      %cst_78 = arith.constant 1.000000e+00 : f32
      %149 = vector.broadcast %cst_78 : f32 to vector<16x128xf32>
      %150 = arith.subf %149, %141 : vector<16x128xf32>
      %151 = arith.mulf %150, %148 : vector<16x128xf32>
      %152 = arith.mulf %141, %122 : vector<16x128xf32>
      %153 = arith.addf %151, %152 : vector<16x128xf32>
      %c0_79 = arith.constant 0 : index
      %c0_80 = arith.constant 0 : index
      %154 = vector.load %arg10[%c0_79, %c0_80] : memref<16x128xf32, #tpu.memory_space<vmem>>, vector<16x128xf32>
      tpu.vector_store %arg10[%c0_79, %c0_80], %153 {strides = array<i32>} : memref<16x128xf32, #tpu.memory_space<vmem>>, vector<16x128xf32>,
      %155 = arith.truncf %153 : vector<16x128xf32> to vector<16x128xbf16>
      %c4_i32_81 = arith.constant 4 : i32
      %156 = arith.muli %arg12, %c4_i32_81 : i32
      %157 = arith.addi %156, %c2_i32_68 : i32
      %158 = arith.index_cast %157 : i32 to index
      %c0_82 = arith.constant 0 : index
      %c0_83 = arith.constant 0 : index
      %159 = vector.load %arg8[%158, %c0_82, %c0_83] : memref<8x16x128xbf16, #tpu.memory_space<vmem>>, vector<1x16x128xbf16>
      %160 = vector.shape_cast %159 : vector<1x16x128xbf16> to vector<16x128xbf16>
      %161 = vector.shape_cast %155 : vector<16x128xbf16> to vector<1x16x128xbf16>
      tpu.vector_store %arg8[%158, %c0_82, %c0_83], %161 {strides = array<i32>} : memref<8x16x128xbf16, #tpu.memory_space<vmem>>, vector<1x16x128xbf16>,
      %c3_i32 = arith.constant 3 : i32
      %c0_84 = arith.constant 0 : index
      %c0_85 = arith.constant 0 : index
      %162 = vector.load %arg10[%c0_84, %c0_85] : memref<16x128xf32, #tpu.memory_space<vmem>>, vector<16x128xf32>
      %163 = arith.truncf %162 : vector<16x128xf32> to vector<16x128xbf16>
      %c0_86 = arith.constant 0 : index
      %c0_87 = arith.constant 0 : index
      %c0_88 = arith.constant 0 : index
      %164 = vector.load %arg5[%c0_86, %c0_87, %c0_88] : memref<1x128x384xbf16, #tpu.memory_space<vmem>>, vector<1x128x384xbf16>
      %165 = vector.shape_cast %164 : vector<1x128x384xbf16> to vector<128x384xbf16>
      %cst_89 = arith.constant dense<0.000000e+00> : vector<16x384xf32>
      %166 = tpu.matmul %163, %165, %cst_89 {dimension_numbers = #tpu.dot_dimension_numbers<[1], [0], [0], [1], [0, 0, 1, 1], [], []>} : vector<16x128xbf16>, vector<128x384xbf16>, vector<16x384xf32> -> vector<16x384xf32>
      %167 = arith.addi %41, %c3_i32 : i32
      %168 = arith.index_cast %167 : i32 to index
      %c0_90 = arith.constant 0 : index
      %c0_91 = arith.constant 0 : index
      %169 = vector.load %arg11[%168, %c0_90, %c0_91] : memref<8x16x384xbf16, #tpu.memory_space<vmem>>, vector<1x16x384xbf16>
      %170 = vector.shape_cast %169 : vector<1x16x384xbf16> to vector<16x384xbf16>
      %171 = vector.extract_strided_slice %170 {offsets = [0, 0], sizes = [16, 256], strides = [1, 1]} : vector<16x384xbf16> to vector<16x256xbf16>
      %172 = vector.extract_strided_slice %166 {offsets = [0, 0], sizes = [16, 256], strides = [1, 1]} : vector<16x384xf32> to vector<16x256xf32>
      %173 = arith.extf %171 : vector<16x256xbf16> to vector<16x256xf32>
      %174 = arith.addf %173, %172 : vector<16x256xf32>
      %175 = arith.negf %174 : vector<16x256xf32>
      %176 = math.exp %175 : vector<16x256xf32>
      %cst_92 = arith.constant 1.000000e+00 : f32
      %177 = vector.broadcast %cst_92 : f32 to vector<16x256xf32>
      %178 = arith.addf %177, %176 : vector<16x256xf32>
      %179 = arith.divf %177, %178 : vector<16x256xf32>
      %180 = vector.extract_strided_slice %179 {offsets = [0, 0], sizes = [16, 128], strides = [1, 1]} : vector<16x256xf32> to vector<16x128xf32>
      %181 = vector.extract_strided_slice %179 {offsets = [0, 128], sizes = [16, 128], strides = [1, 1]} : vector<16x256xf32> to vector<16x128xf32>
      %182 = vector.extract_strided_slice %170 {offsets = [0, 256], sizes = [16, 128], strides = [1, 1]} : vector<16x384xbf16> to vector<16x128xbf16>
      %183 = vector.extract_strided_slice %166 {offsets = [0, 256], sizes = [16, 128], strides = [1, 1]} : vector<16x384xf32> to vector<16x128xf32>
      %184 = arith.addf %183, %21 : vector<16x128xf32>
      %185 = arith.mulf %180, %184 : vector<16x128xf32>
      %186 = arith.extf %182 : vector<16x128xbf16> to vector<16x128xf32>
      %187 = arith.addf %186, %185 : vector<16x128xf32>
      %188 = math.tanh %187 : vector<16x128xf32>
      %cst_93 = arith.constant 1.000000e+00 : f32
      %189 = vector.broadcast %cst_93 : f32 to vector<16x128xf32>
      %190 = arith.subf %189, %181 : vector<16x128xf32>
      %191 = arith.mulf %190, %188 : vector<16x128xf32>
      %192 = arith.mulf %181, %162 : vector<16x128xf32>
      %193 = arith.addf %191, %192 : vector<16x128xf32>
      %c0_94 = arith.constant 0 : index
      %c0_95 = arith.constant 0 : index
      %194 = vector.load %arg10[%c0_94, %c0_95] : memref<16x128xf32, #tpu.memory_space<vmem>>, vector<16x128xf32>
      tpu.vector_store %arg10[%c0_94, %c0_95], %193 {strides = array<i32>} : memref<16x128xf32, #tpu.memory_space<vmem>>, vector<16x128xf32>,
      %195 = arith.truncf %193 : vector<16x128xf32> to vector<16x128xbf16>
      %c4_i32_96 = arith.constant 4 : i32
      %196 = arith.muli %arg12, %c4_i32_96 : i32
      %197 = arith.addi %196, %c3_i32 : i32
      %198 = arith.index_cast %197 : i32 to index
      %c0_97 = arith.constant 0 : index
      %c0_98 = arith.constant 0 : index
      %199 = vector.load %arg8[%198, %c0_97, %c0_98] : memref<8x16x128xbf16, #tpu.memory_space<vmem>>, vector<1x16x128xbf16>
      %200 = vector.shape_cast %199 : vector<1x16x128xbf16> to vector<16x128xbf16>
      %201 = vector.shape_cast %195 : vector<16x128xbf16> to vector<1x16x128xbf16>
      tpu.vector_store %arg8[%198, %c0_97, %c0_98], %201 {strides = array<i32>} : memref<8x16x128xbf16, #tpu.memory_space<vmem>>, vector<1x16x128xbf16>,
      %c4_i32_99 = arith.constant 4 : i32
    }
    %c2_i32_21 = arith.constant 2 : i32
    %c0_22 = arith.constant 0 : index
    %c0_23 = arith.constant 0 : index
    %23 = vector.load %arg10[%c0_22, %c0_23] : memref<16x128xf32, #tpu.memory_space<vmem>>, vector<16x128xf32>
    %c0_24 = arith.constant 0 : index
    %c0_25 = arith.constant 0 : index
    %c0_26 = arith.constant 0 : index
    %24 = vector.load %arg9[%c0_24, %c0_25, %c0_26] : memref<1x16x128xf32, #tpu.memory_space<vmem>>, vector<1x16x128xf32>
    %25 = vector.shape_cast %24 : vector<1x16x128xf32> to vector<16x128xf32>
    %26 = vector.shape_cast %23 : vector<16x128xf32> to vector<1x16x128xf32>
    tpu.vector_store %arg9[%c0_24, %c0_25, %c0_26], %26 {strides = array<i32>} : memref<1x16x128xf32, #tpu.memory_space<vmem>>, vector<1x16x128xf32>,
    return
  }
  func.func @transform_0(%arg0: i32, %arg1: i32) -> (i32, i32, i32) {
    %c0_i32 = arith.constant 0 : i32
    %c0_i32_0 = arith.constant 0 : i32
    %c0_i32_1 = arith.constant 0 : i32
    return %c0_i32, %arg0, %c0_i32_0 : i32, i32, i32
  }
  func.func @transform_1(%arg0: i32, %arg1: i32) -> (i32, i32, i32) {
    %c0_i32 = arith.constant 0 : i32
    %c0_i32_0 = arith.constant 0 : i32
    return %arg1, %arg0, %c0_i32 : i32, i32, i32
  }
  func.func @transform_2(%arg0: i32, %arg1: i32) -> (i32, i32, i32) {
    %c0_i32 = arith.constant 0 : i32
    %c0_i32_0 = arith.constant 0 : i32
    %c0_i32_1 = arith.constant 0 : i32
    return %arg1, %c0_i32, %c0_i32_0 : i32, i32, i32
  }
  func.func @transform_3(%arg0: i32, %arg1: i32) -> (i32, i32, i32) {
    %c0_i32 = arith.constant 0 : i32
    %c0_i32_0 = arith.constant 0 : i32
    %c0_i32_1 = arith.constant 0 : i32
    return %arg1, %c0_i32, %c0_i32_0 : i32, i32, i32
  }
  func.func @transform_4(%arg0: i32, %arg1: i32) -> (i32, i32, i32) {
    %c0_i32 = arith.constant 0 : i32
    %c0_i32_0 = arith.constant 0 : i32
    %c0_i32_1 = arith.constant 0 : i32
    return %arg1, %c0_i32, %c0_i32_0 : i32, i32, i32
  }
  func.func @transform_5(%arg0: i32, %arg1: i32) -> (i32, i32, i32) {
    %c0_i32 = arith.constant 0 : i32
    %c0_i32_0 = arith.constant 0 : i32
    %c0_i32_1 = arith.constant 0 : i32
    return %arg1, %c0_i32, %c0_i32_0 : i32, i32, i32
  }
  func.func @transform_6(%arg0: i32, %arg1: i32) -> (i32, i32, i32) {
    %c0_i32 = arith.constant 0 : i32
    %c0_i32_0 = arith.constant 0 : i32
    %c0_i32_1 = arith.constant 0 : i32
    return %c0_i32, %arg0, %c0_i32_0 : i32, i32, i32
  }
  func.func @transform_7(%arg0: i32, %arg1: i32) -> (i32, i32, i32) {
    %c0_i32 = arith.constant 0 : i32
    %c0_i32_0 = arith.constant 0 : i32
    return %arg1, %arg0, %c0_i32 : i32, i32, i32
  }
}

</mosaic_0001>

<llo_original>
// kernel: encoder_rnn_forward.1
$region0: #{encoder_rnn_forward.1}
  #allocation0 [shape = 'u32[]', space=smem, size = 0x4, offset = 0x4, fixed_abs, tag = 'smem constant byte address 0x4 - core index']
  #allocation1 [shape = 'u32[144,128]{1,0:T(1,128)}', space=vmem, size = 0x12000, scoped, tag = 'internal scratch']
  #allocation2 [shape = 'f32[16,128]{1,0:T(8,128)}', space=vmem, size = 0x2000, scoped, tag = 'scratch operand']
  #allocation3 [shape = 'bf16[8,16,384]{2,1,0:T(8,128)(2,1)}', space=vmem, size = 0x18000, scoped, tag = 'scratch operand']
  %s0 = inlined_call_operand.vmem [shape: bf16[8,16,128], index: 0, kind: input, shape index: {}]
  %s1 = inlined_call_operand.vmem [shape: f32[2,16,128], index: 1, kind: input, shape index: {}]
  %s2 = inlined_call_operand.vmem [shape: bf16[2,128,384], index: 2, kind: input, shape index: {}]
  %s3 = inlined_call_operand.vmem [shape: bf16[2,128,384], index: 3, kind: input, shape index: {}]
  %s4 = inlined_call_operand.vmem [shape: f32[2,1,384], index: 4, kind: input, shape index: {}]
  %s5 = inlined_call_operand.vmem [shape: f32[2,1,128], index: 5, kind: input, shape index: {}]
  %s6 = inlined_call_operand.vmem [shape: bf16[8,16,128], index: 6, kind: output, shape index: {0}]
  %s7 = inlined_call_operand.vmem [shape: f32[2,16,128], index: 7, kind: output, shape index: {1}]
  %8 = xla_tuple %s6, %s7
  %s9 = sld [smem:[#allocation0]]
  $region80: #{encoder_rnn_forward.1} parent=0
    _
  %s11 = ssub.s32 1, %s9
  %s12 = scalar_select 0, %s11, %s9
  loop: start=0, step=1, limit=4
  $region2: #{encoder_rnn_forward.1} parent=0 // loop_pre_header
    _
  $region3: #{encoder_rnn_forward.1} parent=0 // loop_header
    %s14 = sphi 0, %s18
    %p15 = scmp.ge.s32.totalorder %s14, 4
    %s21 = sphi 0, %s33
    %s22 = sphi 0, %s29
    %s23 = sphi 0, %s21
    %s24 = sphi 0, %s22
    %s25 = sphi 0, %s23
    %s26 = sphi 0, %s24
    %s36 = sphi 0, %s38
    %s39 = sphi 0, %s36
    %s40 = sphi 0, %s39
    %s56 = sphi 0, %s40
    %s64 = sphi 0, %s66
    %s67 = sphi 0, %s64
    %s68 = sphi 0, %s67
    %s84 = sphi 0, %s68
    %s90 = sphi 0, %s92
    %s93 = sphi 0, %s90
    %s94 = sphi 0, %s93
    %s110 = sphi 0, %s94
    %s116 = sphi 0, %s118
    %s119 = sphi 0, %s116
    %s120 = sphi 0, %s119
    %s136 = sphi 0, %s120
    %s142 = sphi 0, %s144
    %s145 = sphi 0, %s142
    %s146 = sphi 0, %s145
    %s162 = sphi 0, %s146
    %s168 = sphi 0, %s170
    %s171 = sphi 0, %s168
    %s172 = sphi 0, %s171
    %s188 = sphi 0, %s172
    %s194 = sphi 0, %s196
    %s197 = sphi 0, %s194
    %s198 = sphi 0, %s197
    %s214 = sphi 0, %s198
    %s222 = sphi 0, %s224
    %s225 = sphi 0, %s222
    %s226 = sphi 0, %s225
    %s242 = sphi 0, %s226
  $region4: #{encoder_rnn_forward.1} parent=0 // loop_header_branch
    %17 = sbr.rel (%p15) target = $region8
  $region5: #{encoder_rnn_forward.1} parent=0 // loop_body
    %s19 = ssub.s32 %s14, 1
    %s20 = ssub.s32 %s14, 2
    %s27 = sadd.s32 1, %s22
    %p28 = scmp.ge.s32.totalorder %s27, 2
    %s29 = scalar_select %p28, 0, %s27
    %s30 = sadd.s32 1, %s21
    %s31 = scalar_select %p28, %s30, %s21
    %p32 = scmp.ge.s32.totalorder %s31, 1
    %s33 = scalar_select %p32, 0, %s31
    %s34 = ssub.s32 %s21, %s33
    %p35 = scmp.eq.s32.totalorder %s34, 0
    %s37 = sadd.s32 %s36, 1
    %s38 = scalar_select %p35, %s36, %s37
    %p41 = pneg %p35
    %p42 = scmp.eq.s32.totalorder %s14, 1
    %p43 = por %p41, %p42
    %p44 = scmp.ne.s32.totalorder %s36, %s39
    %p45 = scmp.eq.s32.totalorder %s14, 0
    %p46 = por %p44, %p45
    %p47 = scmp.ne.s32.totalorder %s36, %s39
    %p48 = scmp.eq.s32.totalorder %s19, 1
    %p49 = por %p47, %p48
    %p50 = scmp.ne.s32.totalorder %s39, %s40
    %p51 = scmp.eq.s32.totalorder %s19, 0
    %p52 = por %p50, %p51
    %p53 = scmp.ne.s32.totalorder %s39, %s40
    %p54 = scmp.eq.s32.totalorder %s20, 1
    %p55 = por %p53, %p54
    %p57 = scmp.ne.s32.totalorder %s40, %s56
    %p58 = scmp.eq.s32.totalorder %s20, 0
    %p59 = por %p57, %p58
    %s60 = ssub.s32 %s22, %s29
    %s61 = ssub.s32 %s21, %s33
    %s62 = sor.u32 %s60, %s61
    %p63 = scmp.eq.s32.totalorder %s62, 0
    %s65 = sadd.s32 %s64, 1
    %s66 = scalar_select %p63, %s64, %s65
    %p69 = pneg %p63
    %p70 = scmp.eq.s32.totalorder %s14, 1
    %p71 = por %p69, %p70
    %p72 = scmp.ne.s32.totalorder %s64, %s67
    %p73 = scmp.eq.s32.totalorder %s14, 0
    %p74 = por %p72, %p73
    %p75 = scmp.ne.s32.totalorder %s64, %s67
    %p76 = scmp.eq.s32.totalorder %s19, 1
    %p77 = por %p75, %p76
    %p78 = scmp.ne.s32.totalorder %s67, %s68
    %p79 = scmp.eq.s32.totalorder %s19, 0
    %p80 = por %p78, %p79
    %p81 = scmp.ne.s32.totalorder %s67, %s68
    %p82 = scmp.eq.s32.totalorder %s20, 1
    %p83 = por %p81, %p82
    %p85 = scmp.ne.s32.totalorder %s68, %s84
    %p86 = scmp.eq.s32.totalorder %s20, 0
    %p87 = por %p85, %p86
    %s88 = ssub.s32 %s22, %s29
    %p89 = scmp.eq.s32.totalorder %s88, 0
    %s91 = sadd.s32 %s90, 1
    %s92 = scalar_select %p89, %s90, %s91
    %p95 = pneg %p89
    %p96 = scmp.eq.s32.totalorder %s14, 1
    %p97 = por %p95, %p96
    %p98 = scmp.ne.s32.totalorder %s90, %s93
    %p99 = scmp.eq.s32.totalorder %s14, 0
    %p100 = por %p98, %p99
    %p101 = scmp.ne.s32.totalorder %s90, %s93
    %p102 = scmp.eq.s32.totalorder %s19, 1
    %p103 = por %p101, %p102
    %p104 = scmp.ne.s32.totalorder %s93, %s94
    %p105 = scmp.eq.s32.totalorder %s19, 0
    %p106 = por %p104, %p105
    %p107 = scmp.ne.s32.totalorder %s93, %s94
    %p108 = scmp.eq.s32.totalorder %s20, 1
    %p109 = por %p107, %p108
    %p111 = scmp.ne.s32.totalorder %s94, %s110
    %p112 = scmp.eq.s32.totalorder %s20, 0
    %p113 = por %p111, %p112
    %s114 = ssub.s32 %s22, %s29
    %p115 = scmp.eq.s32.totalorder %s114, 0
    %s117 = sadd.s32 %s116, 1
    %s118 = scalar_select %p115, %s116, %s117
    %p121 = pneg %p115
    %p122 = scmp.eq.s32.totalorder %s14, 1
    %p123 = por %p121, %p122
    %p124 = scmp.ne.s32.totalorder %s116, %s119
    %p125 = scmp.eq.s32.totalorder %s14, 0
    %p126 = por %p124, %p125
    %p127 = scmp.ne.s32.totalorder %s116, %s119
    %p128 = scmp.eq.s32.totalorder %s19, 1
    %p129 = por %p127, %p128
    %p130 = scmp.ne.s32.totalorder %s119, %s120
    %p131 = scmp.eq.s32.totalorder %s19, 0
    %p132 = por %p130, %p131
    %p133 = scmp.ne.s32.totalorder %s119, %s120
    %p134 = scmp.eq.s32.totalorder %s20, 1
    %p135 = por %p133, %p134
    %p137 = scmp.ne.s32.totalorder %s120, %s136
    %p138 = scmp.eq.s32.totalorder %s20, 0
    %p139 = por %p137, %p138
    %s140 = ssub.s32 %s22, %s29
    %p141 = scmp.eq.s32.totalorder %s140, 0
    %s143 = sadd.s32 %s142, 1
    %s144 = scalar_select %p141, %s142, %s143
    %p147 = pneg %p141
    %p148 = scmp.eq.s32.totalorder %s14, 1
    %p149 = por %p147, %p148
    %p150 = scmp.ne.s32.totalorder %s142, %s145
    %p151 = scmp.eq.s32.totalorder %s14, 0
    %p152 = por %p150, %p151
    %p153 = scmp.ne.s32.totalorder %s142, %s145
    %p154 = scmp.eq.s32.totalorder %s19, 1
    %p155 = por %p153, %p154
    %p156 = scmp.ne.s32.totalorder %s145, %s146
    %p157 = scmp.eq.s32.totalorder %s19, 0
    %p158 = por %p156, %p157
    %p159 = scmp.ne.s32.totalorder %s145, %s146
    %p160 = scmp.eq.s32.totalorder %s20, 1
    %p161 = por %p159, %p160
    %p163 = scmp.ne.s32.totalorder %s146, %s162
    %p164 = scmp.eq.s32.totalorder %s20, 0
    %p165 = por %p163, %p164
    %s166 = ssub.s32 %s22, %s29
    %p167 = scmp.eq.s32.totalorder %s166, 0
    %s169 = sadd.s32 %s168, 1
    %s170 = scalar_select %p167, %s168, %s169
    %p173 = pneg %p167
    %p174 = scmp.eq.s32.totalorder %s14, 1
    %p175 = por %p173, %p174
    %p176 = scmp.ne.s32.totalorder %s168, %s171
    %p177 = scmp.eq.s32.totalorder %s14, 0
    %p178 = por %p176, %p177
    %p179 = scmp.ne.s32.totalorder %s168, %s171
    %p180 = scmp.eq.s32.totalorder %s19, 1
    %p181 = por %p179, %p180
    %p182 = scmp.ne.s32.totalorder %s171, %s172
    %p183 = scmp.eq.s32.totalorder %s19, 0
    %p184 = por %p182, %p183
    %p185 = scmp.ne.s32.totalorder %s171, %s172
    %p186 = scmp.eq.s32.totalorder %s20, 1
    %p187 = por %p185, %p186
    %p189 = scmp.ne.s32.totalorder %s172, %s188
    %p190 = scmp.eq.s32.totalorder %s20, 0
    %p191 = por %p189, %p190
    %s192 = ssub.s32 %s21, %s33
    %p193 = scmp.eq.s32.totalorder %s192, 0
    %s195 = sadd.s32 %s194, 1
    %s196 = scalar_select %p193, %s194, %s195
    %p199 = pneg %p193
    %p200 = scmp.eq.s32.totalorder %s14, 1
    %p201 = por %p199, %p200
    %p202 = scmp.ne.s32.totalorder %s194, %s197
    %p203 = scmp.eq.s32.totalorder %s14, 0
    %p204 = por %p202, %p203
    %p205 = scmp.ne.s32.totalorder %s194, %s197
    %p206 = scmp.eq.s32.totalorder %s19, 1
    %p207 = por %p205, %p206
    %p208 = scmp.ne.s32.totalorder %s197, %s198
    %p209 = scmp.eq.s32.totalorder %s19, 0
    %p210 = por %p208, %p209
    %p211 = scmp.ne.s32.totalorder %s197, %s198
    %p212 = scmp.eq.s32.totalorder %s20, 1
    %p213 = por %p211, %p212
    %p215 = scmp.ne.s32.totalorder %s198, %s214
    %p216 = scmp.eq.s32.totalorder %s20, 0
    %p217 = por %p215, %p216
    %s218 = ssub.s32 %s22, %s29
    %s219 = ssub.s32 %s21, %s33
    %s220 = sor.u32 %s218, %s219
    %p221 = scmp.eq.s32.totalorder %s220, 0
    %s223 = sadd.s32 %s222, 1
    %s224 = scalar_select %p221, %s222, %s223
    %p227 = pneg %p221
    %p228 = scmp.eq.s32.totalorder %s14, 1
    %p229 = por %p227, %p228
    %p230 = scmp.ne.s32.totalorder %s222, %s225
    %p231 = scmp.eq.s32.totalorder %s14, 0
    %p232 = por %p230, %p231
    %p233 = scmp.ne.s32.totalorder %s222, %s225
    %p234 = scmp.eq.s32.totalorder %s19, 1
    %p235 = por %p233, %p234
    %p236 = scmp.ne.s32.totalorder %s225, %s226
    %p237 = scmp.eq.s32.totalorder %s19, 0
    %p238 = por %p236, %p237
    %p239 = scmp.ne.s32.totalorder %s225, %s226
    %p240 = scmp.eq.s32.totalorder %s20, 1
    %p241 = por %p239, %p240
    %p243 = scmp.ne.s32.totalorder %s226, %s242
    %p244 = scmp.eq.s32.totalorder %s20, 0
    %p245 = por %p243, %p244
    %p246 = scmp.le.s32.totalorder 1, %s14
    %p247 = scmp.lt.s32.totalorder %s14, 3
    %p248 = pnand %p246, %p247
    %p249 = pneg %p248
    // Predicated region
    $region9: #{encoder_rnn_forward.1} parent=5 // pred_check
      _
    $region10: #{encoder_rnn_forward.1} parent=5 // pred_check_branch
      %251 = sbr.rel (%p248) target = $region12
    $region11: #{encoder_rnn_forward.1} parent=5 // pred_region
      %s252 = ssub.s32 %s14, 1
      // Predicated region
      $region13: #{encoder_rnn_forward.1} parent=11 // pred_check
        %p253 = pneg %p52
      $region14: #{encoder_rnn_forward.1} parent=11 // pred_check_branch
        %255 = sbr.rel (%p253) target = $region16
      $region15: #{encoder_rnn_forward.1} parent=11 // pred_region
        %s256 = smul.u32 2, %s23
        %p257 = scmp.lt.s32.totalorder %s256, 1
        %s258 = scalar_select %p257, %s256, 1
        %s259 = smul.addr %s258, 4
        %s260 = scalar_lea.vmem %s0, %s259
        %s261 = smul.u32 2, %s23
      $region16: #{encoder_rnn_forward.1} parent=11 // pred_fallthru
        _
    $region12: #{encoder_rnn_forward.1} parent=5 // pred_fallthru
      _
    %p262 = scmp.lt.s32.totalorder %s14, 2
    // Predicated region
    $region17: #{encoder_rnn_forward.1} parent=5 // pred_check
      %p263 = pneg %p262
    $region18: #{encoder_rnn_forward.1} parent=5 // pred_check_branch
      %265 = sbr.rel (%p263) target = $region20
    $region19: #{encoder_rnn_forward.1} parent=5 // pred_region
      // Predicated region
      $region21: #{encoder_rnn_forward.1} parent=19 // pred_check
        %p266 = pneg %p74
      $region22: #{encoder_rnn_forward.1} parent=19 // pred_check_branch
        %268 = sbr.rel (%p266) target = $region24
      $region23: #{encoder_rnn_forward.1} parent=19 // pred_region
        %s269 = smul.u32 2, %s21
        %p270 = scmp.lt.s32.totalorder %s22, 1
        %s271 = scalar_select %p270, %s22, 1
        %p272 = scmp.lt.s32.totalorder %s269, 1
        %s273 = scalar_select %p272, %s269, 1
        %s274 = smul.addr %s271, 2
        %s275 = sadd.s32 %s273, %s274
        %s276 = smul.addr %s275, 8
        %s277 = scalar_lea.vmem %s1, %s276
        %s278 = smul.u32 2, %s21
      $region24: #{encoder_rnn_forward.1} parent=19 // pred_fallthru
        _
      // Predicated region
      $region25: #{encoder_rnn_forward.1} parent=19 // pred_check
        %p279 = pneg %p100
      $region26: #{encoder_rnn_forward.1} parent=19 // pred_check_branch
        %281 = sbr.rel (%p279) target = $region28
      $region27: #{encoder_rnn_forward.1} parent=19 // pred_region
        %p282 = scmp.lt.s32.totalorder %s22, 1
        %s283 = scalar_select %p282, %s22, 1
        %s284 = smul.addr %s283, 48
        %s285 = smul.addr %s284, 4
        %s286 = scalar_lea.vmem %s2, %s285
      $region28: #{encoder_rnn_forward.1} parent=19 // pred_fallthru
        _
      // Predicated region
      $region29: #{encoder_rnn_forward.1} parent=19 // pred_check
        %p287 = pneg %p126
      $region30: #{encoder_rnn_forward.1} parent=19 // pred_check_branch
        %289 = sbr.rel (%p287) target = $region32
      $region31: #{encoder_rnn_forward.1} parent=19 // pred_region
        %p290 = scmp.lt.s32.totalorder %s22, 1
        %s291 = scalar_select %p290, %s22, 1
        %s292 = smul.addr %s291, 48
        %s293 = smul.addr %s292, 4
        %s294 = scalar_lea.vmem %s3, %s293
      $region32: #{encoder_rnn_forward.1} parent=19 // pred_fallthru
        _
      // Predicated region
      $region33: #{encoder_rnn_forward.1} parent=19 // pred_check
        %p295 = pneg %p152
      $region34: #{encoder_rnn_forward.1} parent=19 // pred_check_branch
        %297 = sbr.rel (%p295) target = $region36
      $region35: #{encoder_rnn_forward.1} parent=19 // pred_region
        %p298 = scmp.lt.s32.totalorder %s22, 1
        %s299 = scalar_select %p298, %s22, 1
        %s300 = smul.addr %s299, 3
        %s301 = scalar_lea.vmem %s4, %s300
      $region36: #{encoder_rnn_forward.1} parent=19 // pred_fallthru
        _
      // Predicated region
      $region37: #{encoder_rnn_forward.1} parent=19 // pred_check
        %p302 = pneg %p178
      $region38: #{encoder_rnn_forward.1} parent=19 // pred_check_branch
        %304 = sbr.rel (%p302) target = $region40
      $region39: #{encoder_rnn_forward.1} parent=19 // pred_region
        %p305 = scmp.lt.s32.totalorder %s22, 1
        %s306 = scalar_select %p305, %s22, 1
        %s307 = scalar_lea.vmem %s5, %s306
      $region40: #{encoder_rnn_forward.1} parent=19 // pred_fallthru
        _
    $region20: #{encoder_rnn_forward.1} parent=5 // pred_fallthru
      _
    %p308 = scmp.le.s32.totalorder 1, %s14
    %p309 = scmp.lt.s32.totalorder %s14, 3
    %p310 = pnand %p308, %p309
    %p311 = pneg %p310
    // Predicated region
    $region41: #{encoder_rnn_forward.1} parent=5 // pred_check
      _
    $region42: #{encoder_rnn_forward.1} parent=5 // pred_check_branch
      %313 = sbr.rel (%p310) target = $region44
    $region43: #{encoder_rnn_forward.1} parent=5 // pred_region
      %s314 = ssub.s32 %s14, 1
      %s315 = smul.u32 2, %s23
      %p316 = scmp.lt.s32.totalorder %s315, 1
      %s317 = scalar_select %p316, %s315, 1
      %s318 = smul.addr %s317, 4
      %s319 = scalar_lea.vmem %s0, %s318
      %p320 = pneg %p52
      %p321 = pneg %p49
      %s322 = smul.u32 2, %s23
      %p323 = scmp.lt.s32.totalorder %s24, 1
      %s324 = scalar_select %p323, %s24, 1
      %p325 = scmp.lt.s32.totalorder %s322, 1
      %s326 = scalar_select %p325, %s322, 1
      %s327 = smul.addr %s324, 2
      %s328 = sadd.s32 %s326, %s327
      %s329 = smul.addr %s328, 8
      %s330 = scalar_lea.vmem %s1, %s329
      %p331 = pneg %p80
      %p332 = pneg %p77
      %p333 = scmp.lt.s32.totalorder %s24, 1
      %s334 = scalar_select %p333, %s24, 1
      %s335 = smul.addr %s334, 48
      %s336 = smul.addr %s335, 4
      %s337 = scalar_lea.vmem %s2, %s336
      %p338 = pneg %p106
      %p339 = pneg %p103
      %p340 = scmp.lt.s32.totalorder %s24, 1
      %s341 = scalar_select %p340, %s24, 1
      %s342 = smul.addr %s341, 48
      %s343 = smul.addr %s342, 4
      %s344 = scalar_lea.vmem %s3, %s343
      %p345 = pneg %p132
      %p346 = pneg %p129
      %p347 = scmp.lt.s32.totalorder %s24, 1
      %s348 = scalar_select %p347, %s24, 1
      %s349 = smul.addr %s348, 3
      %s350 = scalar_lea.vmem %s4, %s349
      %p351 = pneg %p158
      %p352 = pneg %p155
      %p353 = scmp.lt.s32.totalorder %s24, 1
      %s354 = scalar_select %p353, %s24, 1
      %s355 = scalar_lea.vmem %s5, %s354
      %p356 = pneg %p184
      %p357 = pneg %p181
      %p358 = pneg %p210
      %p359 = pneg %p207
      %s360 = smul.u32 2, %s23
      %p361 = scmp.lt.s32.totalorder %s360, 1
      %s362 = scalar_select %p361, %s360, 1
      %s363 = smul.addr %s362, 4
      %s364 = scalar_lea.vmem %s6, %s363
      %p365 = pneg %p238
      %p366 = pneg %p235
      %s367 = smul.u32 2, %s23
      %p368 = scmp.lt.s32.totalorder %s24, 1
      %s369 = scalar_select %p368, %s24, 1
      %p370 = scmp.lt.s32.totalorder %s367, 1
      %s371 = scalar_select %p370, %s367, 1
      %s372 = smul.addr %s369, 2
      %s373 = sadd.s32 %s371, %s372
      %s374 = smul.addr %s373, 8
      %s375 = scalar_lea.vmem %s7, %s374
      %s376 = smul.u32 2, %s23
      %p377 = scmp.lt.s32.totalorder %s376, 1
      %s378 = scalar_select %p377, %s376, 1
      %s379 = smul.addr %s378, 4
      %s380 = scalar_lea.vmem %s0, %s379
      %s381 = smul.u32 2, %s23
      %s382 = smul.u32 2, %s23
      %p383 = scmp.lt.s32.totalorder %s24, 1
      %s384 = scalar_select %p383, %s24, 1
      %p385 = scmp.lt.s32.totalorder %s382, 1
      %s386 = scalar_select %p385, %s382, 1
      %s387 = smul.addr %s384, 2
      %s388 = sadd.s32 %s386, %s387
      %s389 = smul.addr %s388, 8
      %s390 = scalar_lea.vmem %s1, %s389
      %s391 = smul.u32 2, %s23
      %p392 = scmp.lt.s32.totalorder %s24, 1
      %s393 = scalar_select %p392, %s24, 1
      %s394 = smul.addr %s393, 48
      %s395 = smul.addr %s394, 4
      %s396 = scalar_lea.vmem %s2, %s395
      %p397 = scmp.lt.s32.totalorder %s24, 1
      %s398 = scalar_select %p397, %s24, 1
      %s399 = smul.addr %s398, 48
      %s400 = smul.addr %s399, 4
      %s401 = scalar_lea.vmem %s3, %s400
      %p402 = scmp.lt.s32.totalorder %s24, 1
      %s403 = scalar_select %p402, %s24, 1
      %s404 = smul.addr %s403, 3
      %s405 = scalar_lea.vmem %s4, %s404
      %p406 = scmp.lt.s32.totalorder %s24, 1
      %s407 = scalar_select %p406, %s24, 1
      %s408 = scalar_lea.vmem %s5, %s407
      %s409 = smul.u32 2, %s23
      %p410 = scmp.lt.s32.totalorder %s409, 1
      %s411 = scalar_select %p410, %s409, 1
      %s412 = smul.addr %s411, 4
      %s413 = scalar_lea.vmem %s6, %s412
      %s414 = smul.u32 2, %s23
      %s415 = smul.u32 2, %s23
      %p416 = scmp.lt.s32.totalorder %s24, 1
      %s417 = scalar_select %p416, %s24, 1
      %p418 = scmp.lt.s32.totalorder %s415, 1
      %s419 = scalar_select %p418, %s415, 1
      %s420 = smul.addr %s417, 2
      %s421 = sadd.s32 %s419, %s420
      %s422 = smul.addr %s421, 8
      %s423 = scalar_lea.vmem %s7, %s422
      %s424 = smul.u32 2, %s23
      %p426 = scmp.eq.s32.totalorder %s24, 0
      // Predicated region
      $region45: #{encoder_rnn_forward.1} parent=43 // pred_check
        %p427 = pneg %p426
      $region46: #{encoder_rnn_forward.1} parent=43 // pred_check_branch
        %429 = sbr.rel (%p427) target = $region48
      $region47: #{encoder_rnn_forward.1} parent=43 // pred_region
        %v430 = vld [vmem:[%s380] sm:$0xf]
        %v431 = vld [vmem:[%s380 + $0x4] sm:$0xf]
        %v432 = vld [vmem:[%s380 + $0x8] sm:$0xf]
        %v433 = vld [vmem:[%s380 + $0xc] sm:$0xf]
        %v434 = vld [vmem:[%s380 + $0x10] sm:$0xf]
        %v435 = vld [vmem:[%s380 + $0x14] sm:$0xf]
        %v436 = vld [vmem:[%s380 + $0x18] sm:$0xf]
        %v437 = vld [vmem:[%s380 + $0x1c] sm:$0xf]
        %v438 = vld [vmem:[%s380 + $0x20] sm:$0xf]
        %v439 = vld [vmem:[%s380 + $0x24] sm:$0xf]
        %v440 = vld [vmem:[%s380 + $0x28] sm:$0xf]
        %v441 = vld [vmem:[%s380 + $0x2c] sm:$0xf]
        %v442 = vld [vmem:[%s380 + $0x30] sm:$0xf]
        %v443 = vld [vmem:[%s380 + $0x34] sm:$0xf]
        %v444 = vld [vmem:[%s380 + $0x38] sm:$0xf]
        %v445 = vld [vmem:[%s380 + $0x3c] sm:$0xf]
        %446 = vst [vmem:[%s413] sm:$0xf] %v430
        %447 = vst [vmem:[%s413 + $0x4] sm:$0xf] %v431
        %448 = vst [vmem:[%s413 + $0x8] sm:$0xf] %v432
        %449 = vst [vmem:[%s413 + $0xc] sm:$0xf] %v433
        %450 = vst [vmem:[%s413 + $0x10] sm:$0xf] %v434
        %451 = vst [vmem:[%s413 + $0x14] sm:$0xf] %v435
        %452 = vst [vmem:[%s413 + $0x18] sm:$0xf] %v436
        %453 = vst [vmem:[%s413 + $0x1c] sm:$0xf] %v437
        %454 = vst [vmem:[%s413 + $0x20] sm:$0xf] %v438
        %455 = vst [vmem:[%s413 + $0x24] sm:$0xf] %v439
        %456 = vst [vmem:[%s413 + $0x28] sm:$0xf] %v440
        %457 = vst [vmem:[%s413 + $0x2c] sm:$0xf] %v441
        %458 = vst [vmem:[%s413 + $0x30] sm:$0xf] %v442
        %459 = vst [vmem:[%s413 + $0x34] sm:$0xf] %v443
        %460 = vst [vmem:[%s413 + $0x38] sm:$0xf] %v444
        %461 = vst [vmem:[%s413 + $0x3c] sm:$0xf] %v445
      $region48: #{encoder_rnn_forward.1} parent=43 // pred_fallthru
        _
      %v462 = vld [vmem:[%s390] sm:$0xff]
      %v463 = vld [vmem:[%s390 + $0x8] sm:$0xff]
      %464 = vst [vmem:[#allocation2] sm:$0xff] %v462
      %465 = vst [vmem:[#allocation2 + $0x8] sm:$0xff] %v463
      %v466 = vld [vmem:[%s413] sm:$0xf]
      %v467 = vld [vmem:[%s413 + $0x4] sm:$0xf]
      %v468 = vld [vmem:[%s413 + $0x8] sm:$0xf]
      %v469 = vld [vmem:[%s413 + $0xc] sm:$0xf]
      %v470 = vld [vmem:[%s413 + $0x10] sm:$0xf]
      %v471 = vld [vmem:[%s413 + $0x14] sm:$0xf]
      %v472 = vld [vmem:[%s413 + $0x18] sm:$0xf]
      %v473 = vld [vmem:[%s413 + $0x1c] sm:$0xf]
      %v474 = vld [vmem:[%s396] sm:$0xff]
      %v475 = vld [vmem:[%s396 + $0x8] sm:$0xf]
      %v476 = vld [vmem:[%s396 + $0xc] sm:$0xff]
      %v477 = vld [vmem:[%s396 + $0x14] sm:$0xf]
      %v478 = vld [vmem:[%s396 + $0x18] sm:$0xff]
      %v479 = vld [vmem:[%s396 + $0x20] sm:$0xf]
      %v480 = vld [vmem:[%s396 + $0x24] sm:$0xff]
      %v481 = vld [vmem:[%s396 + $0x2c] sm:$0xf]
      %v482 = vld [vmem:[%s396 + $0x30] sm:$0xff]
      %v483 = vld [vmem:[%s396 + $0x38] sm:$0xf]
      %v484 = vld [vmem:[%s396 + $0x3c] sm:$0xff]
      %v485 = vld [vmem:[%s396 + $0x44] sm:$0xf]
      %v486 = vld [vmem:[%s396 + $0x48] sm:$0xff]
      %v487 = vld [vmem:[%s396 + $0x50] sm:$0xf]
      %v488 = vld [vmem:[%s396 + $0x54] sm:$0xff]
      %v489 = vld [vmem:[%s396 + $0x5c] sm:$0xf]
      %v490 = vld [vmem:[%s396 + $0x60] sm:$0xff]
      %v491 = vld [vmem:[%s396 + $0x68] sm:$0xf]
      %v492 = vld [vmem:[%s396 + $0x6c] sm:$0xff]
      %v493 = vld [vmem:[%s396 + $0x74] sm:$0xf]
      %v494 = vld [vmem:[%s396 + $0x78] sm:$0xff]
      %v495 = vld [vmem:[%s396 + $0x80] sm:$0xf]
      %v496 = vld [vmem:[%s396 + $0x84] sm:$0xff]
      %v497 = vld [vmem:[%s396 + $0x8c] sm:$0xf]
      %v498 = vld [vmem:[%s396 + $0x90] sm:$0xff]
      %v499 = vld [vmem:[%s396 + $0x98] sm:$0xf]
      %v500 = vld [vmem:[%s396 + $0x9c] sm:$0xff]
      %v501 = vld [vmem:[%s396 + $0xa4] sm:$0xf]
      %v502 = vld [vmem:[%s396 + $0xa8] sm:$0xff]
      %v503 = vld [vmem:[%s396 + $0xb0] sm:$0xf]
      %v504 = vld [vmem:[%s396 + $0xb4] sm:$0xff]
      %v505 = vld [vmem:[%s396 + $0xbc] sm:$0xf]
      %v506 = vld [vmem:[%s405] sm:$0x7]
      %v508 = vlaneseq
      %v509 = vshrl.u32 %v508, 7
      %v510 = vsub.s32 0, %v509
      %v511 = vrot.slane %v506, %v510
      %v512 = vlaneseq
      %v513 = vshrl.u32 %v512, 7
      %v514 = vsub.s32 1, %v513
      %v515 = vrot.slane %v506, %v514
      %v516 = vlaneseq
      %v517 = vshrl.u32 %v516, 7
      %v518 = vsub.s32 2, %v517
      %v519 = vrot.slane %v506, %v518
      %v531 = vunpack.c.l.b16 %v466
      %v532 = vunpack.c.l.b16 %v467
      %v533 = vunpack.c.l.b16 %v468
      %v534 = vunpack.c.l.b16 %v469
      %v535 = vunpack.c.l.b16 %v470
      %v536 = vunpack.c.l.b16 %v471
      %v537 = vunpack.c.l.b16 %v472
      %v538 = vunpack.c.l.b16 %v473
      %v539 = vpack.c.b16 %v532, %v531
      %v540 = vpack.c.b16 %v534, %v533
      %v541 = vpack.c.b16 %v536, %v535
      %v542 = vpack.c.b16 %v538, %v537
      %v579 = vunpack.c.l.b16 %v474
      %v580 = vunpack.c.h.b16 %v474
      %v581 = vunpack.c.l.b16 %v475
      %v582 = vunpack.c.l.b16 %v476
      %v583 = vunpack.c.h.b16 %v476
      %v584 = vunpack.c.l.b16 %v477
      %v585 = vunpack.c.l.b16 %v478
      %v586 = vunpack.c.h.b16 %v478
      %v587 = vunpack.c.l.b16 %v479
      %v588 = vunpack.c.l.b16 %v480
      %v589 = vunpack.c.h.b16 %v480
      %v590 = vunpack.c.l.b16 %v481
      %v591 = vunpack.c.l.b16 %v482
      %v592 = vunpack.c.h.b16 %v482
      %v593 = vunpack.c.l.b16 %v483
      %v594 = vunpack.c.l.b16 %v484
      %v595 = vunpack.c.h.b16 %v484
      %v596 = vunpack.c.l.b16 %v485
      %v597 = vunpack.c.l.b16 %v486
      %v598 = vunpack.c.h.b16 %v486
      %v599 = vunpack.c.l.b16 %v487
      %v600 = vunpack.c.l.b16 %v488
      %v601 = vunpack.c.h.b16 %v488
      %v602 = vunpack.c.l.b16 %v489
      %v603 = vunpack.c.l.b16 %v490
      %v604 = vunpack.c.h.b16 %v490
      %v605 = vunpack.c.l.b16 %v491
      %v606 = vunpack.c.l.b16 %v492
      %v607 = vunpack.c.h.b16 %v492
      %v608 = vunpack.c.l.b16 %v493
      %v609 = vunpack.c.l.b16 %v494
      %v610 = vunpack.c.h.b16 %v494
      %v611 = vunpack.c.l.b16 %v495
      %v612 = vunpack.c.l.b16 %v496
      %v613 = vunpack.c.h.b16 %v496
      %v614 = vunpack.c.l.b16 %v497
      %v615 = vunpack.c.l.b16 %v498
      %v616 = vunpack.c.h.b16 %v498
      %v617 = vunpack.c.l.b16 %v499
      %v618 = vunpack.c.l.b16 %v500
      %v619 = vunpack.c.h.b16 %v500
      %v620 = vunpack.c.l.b16 %v501
      %v621 = vunpack.c.l.b16 %v502
      %v622 = vunpack.c.h.b16 %v502
      %v623 = vunpack.c.l.b16 %v503
      %v624 = vunpack.c.l.b16 %v504
      %v625 = vunpack.c.h.b16 %v504
      %v626 = vunpack.c.l.b16 %v505
      %v627 = vpack.c.b16 %v582, %v579
      %v628 = vpack.c.b16 %v583, %v580
      %v629 = vpack.c.b16 %v584, %v581
      %v630 = vpack.c.b16 %v588, %v585
      %v631 = vpack.c.b16 %v589, %v586
      %v632 = vpack.c.b16 %v590, %v587
      %v633 = vpack.c.b16 %v594, %v591
      %v634 = vpack.c.b16 %v595, %v592
      %v635 = vpack.c.b16 %v596, %v593
      %v636 = vpack.c.b16 %v600, %v597
      %v637 = vpack.c.b16 %v601, %v598
      %v638 = vpack.c.b16 %v602, %v599
      %v639 = vpack.c.b16 %v606, %v603
      %v640 = vpack.c.b16 %v607, %v604
      %v641 = vpack.c.b16 %v608, %v605
      %v642 = vpack.c.b16 %v612, %v609
      %v643 = vpack.c.b16 %v613, %v610
      %v644 = vpack.c.b16 %v614, %v611
      %v645 = vpack.c.b16 %v618, %v615
      %v646 = vpack.c.b16 %v619, %v616
      %v647 = vpack.c.b16 %v620, %v617
      %v648 = vpack.c.b16 %v624, %v621
      %v649 = vpack.c.b16 %v625, %v622
      %v650 = vpack.c.b16 %v626, %v623
      %675 = vmatprep.subr.bf16.mxu0 %v649
      %676 = vmatpush1.bf16.msra.mxu0 %v648
      %677 = vmatprep.subr.bf16.mxu0 %v646
      %678 = vmatpush1.bf16.msra.mxu0 %v645
      %679 = vmatprep.subr.bf16.mxu0 %v643
      %680 = vmatpush1.bf16.msra.mxu0 %v642
      %681 = vmatprep.subr.bf16.mxu0 %v640
      %682 = vmatpush1.bf16.msra.mxu0 %v639
      %683 = vmatprep.subr.bf16.mxu0 %v637
      %684 = vmatpush1.bf16.msra.mxu0 %v636
      %685 = vmatprep.subr.bf16.mxu0 %v634
      %686 = vmatpush1.bf16.msra.mxu0 %v633
      %687 = vmatprep.subr.bf16.mxu0 %v631
      %688 = vmatpush1.bf16.msra.mxu0 %v630
      %689 = vmatprep.subr.bf16.mxu0 %v628
      %690 = vmatpush1.bf16.msra.mxu0 %v627
      %691 = vmatprep.subr.bf16.mxu0 0
      %692 = vmatpush2.bf16.msra.mxu0 0
      %693 = vmatprep.subr.bf16.mxu0 0
      %694 = vmatpush2.bf16.msra.mxu0 0
      %695 = vmatprep.subr.bf16.mxu0 0
      %696 = vmatpush2.bf16.msra.mxu0 0
      %697 = vmatprep.subr.bf16.mxu0 0
      %698 = vmatpush2.bf16.msra.mxu0 0
      %699 = vmatprep.subr.bf16.mxu0 0
      %700 = vmatpush2.bf16.msra.mxu0 0
      %701 = vmatprep.subr.bf16.mxu0 0
      %702 = vmatpush2.bf16.msra.mxu0 0
      %703 = vmatprep.subr.bf16.mxu0 0
      %704 = vmatpush2.bf16.msra.mxu0 0
      %705 = vmatprep.subr.bf16.mxu0 0
      %706 = vmatpush2.bf16.msra.mxu0 0
      %707 = vmatprep.mubr.bf16.mxu0 0
      %708 = vmatmul.mubr.bf16.gmra.mxu0 %v539
      %v709 = vpop.f32.mrf.mxu0
      %v710 = vadd.f32 %v511, %v709
      %v711 = vpop.f32.mrf.mxu0
      %v712 = vadd.f32 %v515, %v711
      %v713 = vpop.f32.mrf.mxu0
      %v714 = vadd.f32 %v511, %v713
      %v715 = vpop.f32.mrf.mxu0
      %v716 = vadd.f32 %v515, %v715
      %717 = vmatprep.mubr.bf16.mxu0 0
      %718 = vmatmul.mubr.bf16.gmra.mxu0 %v540
      %v719 = vpop.f32.mrf.mxu0
      %v720 = vadd.f32 %v511, %v719
      %v721 = vpop.f32.mrf.mxu0
      %v722 = vadd.f32 %v515, %v721
      %v723 = vpop.f32.mrf.mxu0
      %v724 = vadd.f32 %v511, %v723
      %v725 = vpop.f32.mrf.mxu0
      %v726 = vadd.f32 %v515, %v725
      %727 = vmatprep.mubr.bf16.mxu0 0
      %728 = vmatmul.mubr.bf16.gmra.mxu0 %v541
      %v729 = vpop.f32.mrf.mxu0
      %v730 = vadd.f32 %v511, %v729
      %v731 = vpop.f32.mrf.mxu0
      %v732 = vadd.f32 %v515, %v731
      %v733 = vpop.f32.mrf.mxu0
      %v734 = vadd.f32 %v511, %v733
      %v735 = vpop.f32.mrf.mxu0
      %v736 = vadd.f32 %v515, %v735
      %737 = vmatprep.mubr.bf16.mxu0 0
      %738 = vmatmul.mubr.bf16.gmra.mxu0 %v542
      %v739 = vpop.f32.mrf.mxu0
      %v740 = vadd.f32 %v511, %v739
      %v741 = vpop.f32.mrf.mxu0
      %v742 = vadd.f32 %v515, %v741
      %v743 = vpop.f32.mrf.mxu0
      %v744 = vadd.f32 %v511, %v743
      %v745 = vpop.f32.mrf.mxu0
      %v746 = vadd.f32 %v515, %v745
      %747 = vdwg.mxu0
      %748 = vmatprep.subr.bf16.mxu0 0
      %749 = vmatpush1.bf16.msra.mxu0 %v650
      %750 = vmatprep.subr.bf16.mxu0 0
      %751 = vmatpush1.bf16.msra.mxu0 %v647
      %752 = vmatprep.subr.bf16.mxu0 0
      %753 = vmatpush1.bf16.msra.mxu0 %v644
      %754 = vmatprep.subr.bf16.mxu0 0
      %755 = vmatpush1.bf16.msra.mxu0 %v641
      %756 = vmatprep.subr.bf16.mxu0 0
      %757 = vmatpush1.bf16.msra.mxu0 %v638
      %758 = vmatprep.subr.bf16.mxu0 0
      %759 = vmatpush1.bf16.msra.mxu0 %v635
      %760 = vmatprep.subr.bf16.mxu0 0
      %761 = vmatpush1.bf16.msra.mxu0 %v632
      %762 = vmatprep.subr.bf16.mxu0 0
      %763 = vmatpush1.bf16.msra.mxu0 %v629
      %764 = vmatprep.subr.bf16.mxu0 0
      %765 = vmatpush2.bf16.msra.mxu0 0
      %766 = vmatprep.subr.bf16.mxu0 0
      %767 = vmatpush2.bf16.msra.mxu0 0
      %768 = vmatprep.subr.bf16.mxu0 0
      %769 = vmatpush2.bf16.msra.mxu0 0
      %770 = vmatprep.subr.bf16.mxu0 0
      %771 = vmatpush2.bf16.msra.mxu0 0
      %772 = vmatprep.subr.bf16.mxu0 0
      %773 = vmatpush2.bf16.msra.mxu0 0
      %774 = vmatprep.subr.bf16.mxu0 0
      %775 = vmatpush2.bf16.msra.mxu0 0
      %776 = vmatprep.subr.bf16.mxu0 0
      %777 = vmatpush2.bf16.msra.mxu0 0
      %778 = vmatprep.subr.bf16.mxu0 0
      %779 = vmatpush2.bf16.msra.mxu0 0
      %780 = vmatprep.mubr.bf16.mxu0 0
      %781 = vmatmul.mubr.bf16.gmra.mxu0 %v539
      %v782 = vpop.f32.mrf.mxu0
      %v783 = vadd.f32 %v519, %v782
      %v784 = vpop.f32.mrf.mxu0
      %v785 = vpop.f32.mrf.mxu0
      %v786 = vadd.f32 %v519, %v785
      %v787 = vpop.f32.mrf.mxu0
      %788 = vmatprep.mubr.bf16.mxu0 0
      %789 = vmatmul.mubr.bf16.gmra.mxu0 %v540
      %v790 = vpop.f32.mrf.mxu0
      %v791 = vadd.f32 %v519, %v790
      %v792 = vpop.f32.mrf.mxu0
      %v793 = vpop.f32.mrf.mxu0
      %v794 = vadd.f32 %v519, %v793
      %v795 = vpop.f32.mrf.mxu0
      %796 = vmatprep.mubr.bf16.mxu0 0
      %797 = vmatmul.mubr.bf16.gmra.mxu0 %v541
      %v798 = vpop.f32.mrf.mxu0
      %v799 = vadd.f32 %v519, %v798
      %v800 = vpop.f32.mrf.mxu0
      %v801 = vpop.f32.mrf.mxu0
      %v802 = vadd.f32 %v519, %v801
      %v803 = vpop.f32.mrf.mxu0
      %804 = vmatprep.mubr.bf16.mxu0 0
      %805 = vmatmul.mubr.bf16.gmra.mxu0 %v542
      %v806 = vpop.f32.mrf.mxu0
      %v807 = vadd.f32 %v519, %v806
      %v808 = vpop.f32.mrf.mxu0
      %v809 = vpop.f32.mrf.mxu0
      %v810 = vadd.f32 %v519, %v809
      %v811 = vpop.f32.mrf.mxu0
      %812 = vdwg.mxu0
      %v813 = vpack.c.bf16 %v714, %v710
      %v814 = vpack.c.bf16 %v716, %v712
      %v815 = vpack.c.bf16 %v786, %v783
      %v816 = vpack.c.bf16 %v724, %v720
      %v817 = vpack.c.bf16 %v726, %v722
      %v818 = vpack.c.bf16 %v794, %v791
      %v819 = vpack.c.bf16 %v734, %v730
      %v820 = vpack.c.bf16 %v736, %v732
      %v821 = vpack.c.bf16 %v802, %v799
      %v822 = vpack.c.bf16 %v744, %v740
      %v823 = vpack.c.bf16 %v746, %v742
      %v824 = vpack.c.bf16 %v810, %v807
      %v837 = vunpack.c.l.b16 %v813
      %v838 = vunpack.c.l.b16 %v814
      %v839 = vunpack.c.l.b16 %v815
      %v840 = vunpack.c.h.b16 %v813
      %v841 = vunpack.c.h.b16 %v814
      %v842 = vunpack.c.h.b16 %v815
      %v843 = vunpack.c.l.b16 %v816
      %v844 = vunpack.c.l.b16 %v817
      %v845 = vunpack.c.l.b16 %v818
      %v846 = vunpack.c.h.b16 %v816
      %v847 = vunpack.c.h.b16 %v817
      %v848 = vunpack.c.h.b16 %v818
      %v849 = vunpack.c.l.b16 %v819
      %v850 = vunpack.c.l.b16 %v820
      %v851 = vunpack.c.l.b16 %v821
      %v852 = vunpack.c.h.b16 %v819
      %v853 = vunpack.c.h.b16 %v820
      %v854 = vunpack.c.h.b16 %v821
      %v855 = vunpack.c.l.b16 %v822
      %v856 = vunpack.c.l.b16 %v823
      %v857 = vunpack.c.l.b16 %v824
      %v858 = vunpack.c.h.b16 %v822
      %v859 = vunpack.c.h.b16 %v823
      %v860 = vunpack.c.h.b16 %v824
      %v861 = vpack.c.b16 %v838, %v837
      %v862 = vpack.c.b16 %v839, %v839
      %v863 = vpack.c.b16 %v841, %v840
      %v864 = vpack.c.b16 %v842, %v842
      %v865 = vpack.c.b16 %v844, %v843
      %v866 = vpack.c.b16 %v845, %v845
      %v867 = vpack.c.b16 %v847, %v846
      %v868 = vpack.c.b16 %v848, %v848
      %v869 = vpack.c.b16 %v850, %v849
      %v870 = vpack.c.b16 %v851, %v851
      %v871 = vpack.c.b16 %v853, %v852
      %v872 = vpack.c.b16 %v854, %v854
      %v873 = vpack.c.b16 %v856, %v855
      %v874 = vpack.c.b16 %v857, %v857
      %v875 = vpack.c.b16 %v859, %v858
      %v876 = vpack.c.b16 %v860, %v860
      %893 = vst [vmem:[#allocation3] sm:$0xff] %v861
      %894 = vst [vmem:[#allocation3 + $0x8] sm:$0xf] %v862
      %895 = vst [vmem:[#allocation3 + $0xc] sm:$0xff] %v863
      %896 = vst [vmem:[#allocation3 + $0x14] sm:$0xf] %v864
      %897 = vst [vmem:[#allocation3 + $0x18] sm:$0xff] %v865
      %898 = vst [vmem:[#allocation3 + $0x20] sm:$0xf] %v866
      %899 = vst [vmem:[#allocation3 + $0x24] sm:$0xff] %v867
      %900 = vst [vmem:[#allocation3 + $0x2c] sm:$0xf] %v868
      %901 = vst [vmem:[#allocation3 + $0x30] sm:$0xff] %v869
      %902 = vst [vmem:[#allocation3 + $0x38] sm:$0xf] %v870
      %903 = vst [vmem:[#allocation3 + $0x3c] sm:$0xff] %v871
      %904 = vst [vmem:[#allocation3 + $0x44] sm:$0xf] %v872
      %905 = vst [vmem:[#allocation3 + $0x48] sm:$0xff] %v873
      %906 = vst [vmem:[#allocation3 + $0x50] sm:$0xf] %v874
      %907 = vst [vmem:[#allocation3 + $0x54] sm:$0xff] %v875
      %908 = vst [vmem:[#allocation3 + $0x5c] sm:$0xf] %v876
      %v909 = vld [vmem:[%s408] sm:$0x1]
      %v911 = vlaneseq
      %v912 = vshrl.u32 %v911, 7
      %v913 = vsub.s32 0, %v912
      %v914 = vrot.slane %v909, %v913
      loop: start=0, step=1, limit=2
      $region49: #{encoder_rnn_forward.1} parent=43 // loop_pre_header
        _
      $region50: #{encoder_rnn_forward.1} parent=43 // loop_header
        %s917 = sphi 0, %s921
        %p918 = scmp.ge.s32.totalorder %s917, 2
      $region51: #{encoder_rnn_forward.1} parent=43 // loop_header_branch
        %920 = sbr.rel (%p918) target = $region55
      $region52: #{encoder_rnn_forward.1} parent=43 // loop_body
        %p922 = scmp.lt.s32.totalorder %s917, 0
        %s923 = ssub.s32 0, %s917
        %s924 = scalar_select %p922, %s923, %s917
        %s925 = sand.u32 %s924, 1
        %s926 = ssub.s32 0, %s925
        %s927 = scalar_select %p922, %s926, %s925
        %p928 = scmp.ne.s32.totalorder %s927, 0
        %p929 = scmp.lt.s32.totalorder %s927, 0
        %p930 = pnand %p929, %p928
        %p931 = pneg %p930
        %s932 = sadd.s32 %s927, 2
        %s933 = scalar_select %p931, %s932, %s927
        %s934 = sadd.s32 %s917, 1
        %p935 = scmp.lt.s32.totalorder %s934, 2
        // Predicated region
        $region56: #{encoder_rnn_forward.1} parent=52 // pred_check
          %p936 = pneg %p935
        $region57: #{encoder_rnn_forward.1} parent=52 // pred_check_branch
          %938 = sbr.rel (%p936) target = $region59
        $region58: #{encoder_rnn_forward.1} parent=52 // pred_region
          %s939 = ssub.s32 1, %s933
          %s940 = smul.u32 %s934, 4
          %s941 = smul.u32 %s940, 2
          %s942 = smul.addr %s941, 4
          %s943 = scalar_lea.vmem %s413, %s942
          %v944 = vld [vmem:[%s943] sm:$0xf]
          %v945 = vld [vmem:[%s943 + $0x4] sm:$0xf]
          %v946 = vld [vmem:[%s943 + $0x8] sm:$0xf]
          %v947 = vld [vmem:[%s943 + $0xc] sm:$0xf]
          %v948 = vld [vmem:[%s943 + $0x10] sm:$0xf]
          %v949 = vld [vmem:[%s943 + $0x14] sm:$0xf]
          %v950 = vld [vmem:[%s943 + $0x18] sm:$0xf]
          %v951 = vld [vmem:[%s943 + $0x1c] sm:$0xf]
          %v952 = vld [vmem:[%s396] sm:$0xff]
          %v953 = vld [vmem:[%s396 + $0x8] sm:$0xf]
          %v954 = vld [vmem:[%s396 + $0xc] sm:$0xff]
          %v955 = vld [vmem:[%s396 + $0x14] sm:$0xf]
          %v956 = vld [vmem:[%s396 + $0x18] sm:$0xff]
          %v957 = vld [vmem:[%s396 + $0x20] sm:$0xf]
          %v958 = vld [vmem:[%s396 + $0x24] sm:$0xff]
          %v959 = vld [vmem:[%s396 + $0x2c] sm:$0xf]
          %v960 = vld [vmem:[%s396 + $0x30] sm:$0xff]
          %v961 = vld [vmem:[%s396 + $0x38] sm:$0xf]
          %v962 = vld [vmem:[%s396 + $0x3c] sm:$0xff]
          %v963 = vld [vmem:[%s396 + $0x44] sm:$0xf]
          %v964 = vld [vmem:[%s396 + $0x48] sm:$0xff]
          %v965 = vld [vmem:[%s396 + $0x50] sm:$0xf]
          %v966 = vld [vmem:[%s396 + $0x54] sm:$0xff]
          %v967 = vld [vmem:[%s396 + $0x5c] sm:$0xf]
          %v968 = vld [vmem:[%s396 + $0x60] sm:$0xff]
          %v969 = vld [vmem:[%s396 + $0x68] sm:$0xf]
          %v970 = vld [vmem:[%s396 + $0x6c] sm:$0xff]
          %v971 = vld [vmem:[%s396 + $0x74] sm:$0xf]
          %v972 = vld [vmem:[%s396 + $0x78] sm:$0xff]
          %v973 = vld [vmem:[%s396 + $0x80] sm:$0xf]
          %v974 = vld [vmem:[%s396 + $0x84] sm:$0xff]
          %v975 = vld [vmem:[%s396 + $0x8c] sm:$0xf]
          %v976 = vld [vmem:[%s396 + $0x90] sm:$0xff]
          %v977 = vld [vmem:[%s396 + $0x98] sm:$0xf]
          %v978 = vld [vmem:[%s396 + $0x9c] sm:$0xff]
          %v979 = vld [vmem:[%s396 + $0xa4] sm:$0xf]
          %v980 = vld [vmem:[%s396 + $0xa8] sm:$0xff]
          %v981 = vld [vmem:[%s396 + $0xb0] sm:$0xf]
          %v982 = vld [vmem:[%s396 + $0xb4] sm:$0xff]
          %v983 = vld [vmem:[%s396 + $0xbc] sm:$0xf]
          %v984 = vld [vmem:[%s405] sm:$0x7]
          %v986 = vlaneseq
          %v987 = vshrl.u32 %v986, 7
          %v988 = vsub.s32 0, %v987
          %v989 = vrot.slane %v984, %v988
          %v990 = vlaneseq
          %v991 = vshrl.u32 %v990, 7
          %v992 = vsub.s32 1, %v991
          %v993 = vrot.slane %v984, %v992
          %v994 = vlaneseq
          %v995 = vshrl.u32 %v994, 7
          %v996 = vsub.s32 2, %v995
          %v997 = vrot.slane %v984, %v996
          %v1009 = vunpack.c.l.b16 %v944
          %v1010 = vunpack.c.l.b16 %v945
          %v1011 = vunpack.c.l.b16 %v946
          %v1012 = vunpack.c.l.b16 %v947
          %v1013 = vunpack.c.l.b16 %v948
          %v1014 = vunpack.c.l.b16 %v949
          %v1015 = vunpack.c.l.b16 %v950
          %v1016 = vunpack.c.l.b16 %v951
          %v1017 = vpack.c.b16 %v1010, %v1009
          %v1018 = vpack.c.b16 %v1012, %v1011
          %v1019 = vpack.c.b16 %v1014, %v1013
          %v1020 = vpack.c.b16 %v1016, %v1015
          %v1057 = vunpack.c.l.b16 %v952
          %v1058 = vunpack.c.h.b16 %v952
          %v1059 = vunpack.c.l.b16 %v953
          %v1060 = vunpack.c.l.b16 %v954
          %v1061 = vunpack.c.h.b16 %v954
          %v1062 = vunpack.c.l.b16 %v955
          %v1063 = vunpack.c.l.b16 %v956
          %v1064 = vunpack.c.h.b16 %v956
          %v1065 = vunpack.c.l.b16 %v957
          %v1066 = vunpack.c.l.b16 %v958
          %v1067 = vunpack.c.h.b16 %v958
          %v1068 = vunpack.c.l.b16 %v959
          %v1069 = vunpack.c.l.b16 %v960
          %v1070 = vunpack.c.h.b16 %v960
          %v1071 = vunpack.c.l.b16 %v961
          %v1072 = vunpack.c.l.b16 %v962
          %v1073 = vunpack.c.h.b16 %v962
          %v1074 = vunpack.c.l.b16 %v963
          %v1075 = vunpack.c.l.b16 %v964
          %v1076 = vunpack.c.h.b16 %v964
          %v1077 = vunpack.c.l.b16 %v965
          %v1078 = vunpack.c.l.b16 %v966
          %v1079 = vunpack.c.h.b16 %v966
          %v1080 = vunpack.c.l.b16 %v967
          %v1081 = vunpack.c.l.b16 %v968
          %v1082 = vunpack.c.h.b16 %v968
          %v1083 = vunpack.c.l.b16 %v969
          %v1084 = vunpack.c.l.b16 %v970
          %v1085 = vunpack.c.h.b16 %v970
          %v1086 = vunpack.c.l.b16 %v971
          %v1087 = vunpack.c.l.b16 %v972
          %v1088 = vunpack.c.h.b16 %v972
          %v1089 = vunpack.c.l.b16 %v973
          %v1090 = vunpack.c.l.b16 %v974
          %v1091 = vunpack.c.h.b16 %v974
          %v1092 = vunpack.c.l.b16 %v975
          %v1093 = vunpack.c.l.b16 %v976
          %v1094 = vunpack.c.h.b16 %v976
          %v1095 = vunpack.c.l.b16 %v977
          %v1096 = vunpack.c.l.b16 %v978
          %v1097 = vunpack.c.h.b16 %v978
          %v1098 = vunpack.c.l.b16 %v979
          %v1099 = vunpack.c.l.b16 %v980
          %v1100 = vunpack.c.h.b16 %v980
          %v1101 = vunpack.c.l.b16 %v981
          %v1102 = vunpack.c.l.b16 %v982
          %v1103 = vunpack.c.h.b16 %v982
          %v1104 = vunpack.c.l.b16 %v983
          %v1105 = vpack.c.b16 %v1060, %v1057
          %v1106 = vpack.c.b16 %v1061, %v1058
          %v1107 = vpack.c.b16 %v1062, %v1059
          %v1108 = vpack.c.b16 %v1066, %v1063
          %v1109 = vpack.c.b16 %v1067, %v1064
          %v1110 = vpack.c.b16 %v1068, %v1065
          %v1111 = vpack.c.b16 %v1072, %v1069
          %v1112 = vpack.c.b16 %v1073, %v1070
          %v1113 = vpack.c.b16 %v1074, %v1071
          %v1114 = vpack.c.b16 %v1078, %v1075
          %v1115 = vpack.c.b16 %v1079, %v1076
          %v1116 = vpack.c.b16 %v1080, %v1077
          %v1117 = vpack.c.b16 %v1084, %v1081
          %v1118 = vpack.c.b16 %v1085, %v1082
          %v1119 = vpack.c.b16 %v1086, %v1083
          %v1120 = vpack.c.b16 %v1090, %v1087
          %v1121 = vpack.c.b16 %v1091, %v1088
          %v1122 = vpack.c.b16 %v1092, %v1089
          %v1123 = vpack.c.b16 %v1096, %v1093
          %v1124 = vpack.c.b16 %v1097, %v1094
          %v1125 = vpack.c.b16 %v1098, %v1095
          %v1126 = vpack.c.b16 %v1102, %v1099
          %v1127 = vpack.c.b16 %v1103, %v1100
          %v1128 = vpack.c.b16 %v1104, %v1101
          %1153 = vmatprep.subr.bf16.mxu0 %v1127
          %1154 = vmatpush1.bf16.msra.mxu0 %v1126
          %1155 = vmatprep.subr.bf16.mxu0 %v1124
          %1156 = vmatpush1.bf16.msra.mxu0 %v1123
          %1157 = vmatprep.subr.bf16.mxu0 %v1121
          %1158 = vmatpush1.bf16.msra.mxu0 %v1120
          %1159 = vmatprep.subr.bf16.mxu0 %v1118
          %1160 = vmatpush1.bf16.msra.mxu0 %v1117
          %1161 = vmatprep.subr.bf16.mxu0 %v1115
          %1162 = vmatpush1.bf16.msra.mxu0 %v1114
          %1163 = vmatprep.subr.bf16.mxu0 %v1112
          %1164 = vmatpush1.bf16.msra.mxu0 %v1111
          %1165 = vmatprep.subr.bf16.mxu0 %v1109
          %1166 = vmatpush1.bf16.msra.mxu0 %v1108
          %1167 = vmatprep.subr.bf16.mxu0 %v1106
          %1168 = vmatpush1.bf16.msra.mxu0 %v1105
          %1169 = vmatprep.subr.bf16.mxu0 0
          %1170 = vmatpush2.bf16.msra.mxu0 0
          %1171 = vmatprep.subr.bf16.mxu0 0
          %1172 = vmatpush2.bf16.msra.mxu0 0
          %1173 = vmatprep.subr.bf16.mxu0 0
          %1174 = vmatpush2.bf16.msra.mxu0 0
          %1175 = vmatprep.subr.bf16.mxu0 0
          %1176 = vmatpush2.bf16.msra.mxu0 0
          %1177 = vmatprep.subr.bf16.mxu0 0
          %1178 = vmatpush2.bf16.msra.mxu0 0
          %1179 = vmatprep.subr.bf16.mxu0 0
          %1180 = vmatpush2.bf16.msra.mxu0 0
          %1181 = vmatprep.subr.bf16.mxu0 0
          %1182 = vmatpush2.bf16.msra.mxu0 0
          %1183 = vmatprep.subr.bf16.mxu0 0
          %1184 = vmatpush2.bf16.msra.mxu0 0
          %1185 = vmatprep.mubr.bf16.mxu0 0
          %1186 = vmatmul.mubr.bf16.gmra.mxu0 %v1017
          %v1187 = vpop.f32.mrf.mxu0
          %v1188 = vadd.f32 %v989, %v1187
          %v1189 = vpop.f32.mrf.mxu0
          %v1190 = vadd.f32 %v993, %v1189
          %v1191 = vpop.f32.mrf.mxu0
          %v1192 = vadd.f32 %v989, %v1191
          %v1193 = vpop.f32.mrf.mxu0
          %v1194 = vadd.f32 %v993, %v1193
          %1195 = vmatprep.mubr.bf16.mxu0 0
          %1196 = vmatmul.mubr.bf16.gmra.mxu0 %v1018
          %v1197 = vpop.f32.mrf.mxu0
          %v1198 = vadd.f32 %v989, %v1197
          %v1199 = vpop.f32.mrf.mxu0
          %v1200 = vadd.f32 %v993, %v1199
          %v1201 = vpop.f32.mrf.mxu0
          %v1202 = vadd.f32 %v989, %v1201
          %v1203 = vpop.f32.mrf.mxu0
          %v1204 = vadd.f32 %v993, %v1203
          %1205 = vmatprep.mubr.bf16.mxu0 0
          %1206 = vmatmul.mubr.bf16.gmra.mxu0 %v1019
          %v1207 = vpop.f32.mrf.mxu0
          %v1208 = vadd.f32 %v989, %v1207
          %v1209 = vpop.f32.mrf.mxu0
          %v1210 = vadd.f32 %v993, %v1209
          %v1211 = vpop.f32.mrf.mxu0
          %v1212 = vadd.f32 %v989, %v1211
          %v1213 = vpop.f32.mrf.mxu0
          %v1214 = vadd.f32 %v993, %v1213
          %1215 = vmatprep.mubr.bf16.mxu0 0
          %1216 = vmatmul.mubr.bf16.gmra.mxu0 %v1020
          %v1217 = vpop.f32.mrf.mxu0
          %v1218 = vadd.f32 %v989, %v1217
          %v1219 = vpop.f32.mrf.mxu0
          %v1220 = vadd.f32 %v993, %v1219
          %v1221 = vpop.f32.mrf.mxu0
          %v1222 = vadd.f32 %v989, %v1221
          %v1223 = vpop.f32.mrf.mxu0
          %v1224 = vadd.f32 %v993, %v1223
          %1225 = vdwg.mxu0
          %1226 = vmatprep.subr.bf16.mxu0 0
          %1227 = vmatpush1.bf16.msra.mxu0 %v1128
          %1228 = vmatprep.subr.bf16.mxu0 0
          %1229 = vmatpush1.bf16.msra.mxu0 %v1125
          %1230 = vmatprep.subr.bf16.mxu0 0
          %1231 = vmatpush1.bf16.msra.mxu0 %v1122
          %1232 = vmatprep.subr.bf16.mxu0 0
          %1233 = vmatpush1.bf16.msra.mxu0 %v1119
          %1234 = vmatprep.subr.bf16.mxu0 0
          %1235 = vmatpush1.bf16.msra.mxu0 %v1116
          %1236 = vmatprep.subr.bf16.mxu0 0
          %1237 = vmatpush1.bf16.msra.mxu0 %v1113
          %1238 = vmatprep.subr.bf16.mxu0 0
          %1239 = vmatpush1.bf16.msra.mxu0 %v1110
          %1240 = vmatprep.subr.bf16.mxu0 0
          %1241 = vmatpush1.bf16.msra.mxu0 %v1107
          %1242 = vmatprep.subr.bf16.mxu0 0
          %1243 = vmatpush2.bf16.msra.mxu0 0
          %1244 = vmatprep.subr.bf16.mxu0 0
          %1245 = vmatpush2.bf16.msra.mxu0 0
          %1246 = vmatprep.subr.bf16.mxu0 0
          %1247 = vmatpush2.bf16.msra.mxu0 0
          %1248 = vmatprep.subr.bf16.mxu0 0
          %1249 = vmatpush2.bf16.msra.mxu0 0
          %1250 = vmatprep.subr.bf16.mxu0 0
          %1251 = vmatpush2.bf16.msra.mxu0 0
          %1252 = vmatprep.subr.bf16.mxu0 0
          %1253 = vmatpush2.bf16.msra.mxu0 0
          %1254 = vmatprep.subr.bf16.mxu0 0
          %1255 = vmatpush2.bf16.msra.mxu0 0
          %1256 = vmatprep.subr.bf16.mxu0 0
          %1257 = vmatpush2.bf16.msra.mxu0 0
          %1258 = vmatprep.mubr.bf16.mxu0 0
          %1259 = vmatmul.mubr.bf16.gmra.mxu0 %v1017
          %v1260 = vpop.f32.mrf.mxu0
          %v1261 = vadd.f32 %v997, %v1260
          %v1262 = vpop.f32.mrf.mxu0
          %v1263 = vpop.f32.mrf.mxu0
          %v1264 = vadd.f32 %v997, %v1263
          %v1265 = vpop.f32.mrf.mxu0
          %1266 = vmatprep.mubr.bf16.mxu0 0
          %1267 = vmatmul.mubr.bf16.gmra.mxu0 %v1018
          %v1268 = vpop.f32.mrf.mxu0
          %v1269 = vadd.f32 %v997, %v1268
          %v1270 = vpop.f32.mrf.mxu0
          %v1271 = vpop.f32.mrf.mxu0
          %v1272 = vadd.f32 %v997, %v1271
          %v1273 = vpop.f32.mrf.mxu0
          %1274 = vmatprep.mubr.bf16.mxu0 0
          %1275 = vmatmul.mubr.bf16.gmra.mxu0 %v1019
          %v1276 = vpop.f32.mrf.mxu0
          %v1277 = vadd.f32 %v997, %v1276
          %v1278 = vpop.f32.mrf.mxu0
          %v1279 = vpop.f32.mrf.mxu0
          %v1280 = vadd.f32 %v997, %v1279
          %v1281 = vpop.f32.mrf.mxu0
          %1282 = vmatprep.mubr.bf16.mxu0 0
          %1283 = vmatmul.mubr.bf16.gmra.mxu0 %v1020
          %v1284 = vpop.f32.mrf.mxu0
          %v1285 = vadd.f32 %v997, %v1284
          %v1286 = vpop.f32.mrf.mxu0
          %v1287 = vpop.f32.mrf.mxu0
          %v1288 = vadd.f32 %v997, %v1287
          %v1289 = vpop.f32.mrf.mxu0
          %1290 = vdwg.mxu0
          %v1291 = vpack.c.bf16 %v1192, %v1188
          %v1292 = vpack.c.bf16 %v1194, %v1190
          %v1293 = vpack.c.bf16 %v1264, %v1261
          %v1294 = vpack.c.bf16 %v1202, %v1198
          %v1295 = vpack.c.bf16 %v1204, %v1200
          %v1296 = vpack.c.bf16 %v1272, %v1269
          %v1297 = vpack.c.bf16 %v1212, %v1208
          %v1298 = vpack.c.bf16 %v1214, %v1210
          %v1299 = vpack.c.bf16 %v1280, %v1277
          %v1300 = vpack.c.bf16 %v1222, %v1218
          %v1301 = vpack.c.bf16 %v1224, %v1220
          %v1302 = vpack.c.bf16 %v1288, %v1285
          %s1303 = smul.u32 %s939, 4
          %v1316 = vunpack.c.l.b16 %v1291
          %v1317 = vunpack.c.l.b16 %v1292
          %v1318 = vunpack.c.l.b16 %v1293
          %v1319 = vunpack.c.h.b16 %v1291
          %v1320 = vunpack.c.h.b16 %v1292
          %v1321 = vunpack.c.h.b16 %v1293
          %v1322 = vunpack.c.l.b16 %v1294
          %v1323 = vunpack.c.l.b16 %v1295
          %v1324 = vunpack.c.l.b16 %v1296
          %v1325 = vunpack.c.h.b16 %v1294
          %v1326 = vunpack.c.h.b16 %v1295
          %v1327 = vunpack.c.h.b16 %v1296
          %v1328 = vunpack.c.l.b16 %v1297
          %v1329 = vunpack.c.l.b16 %v1298
          %v1330 = vunpack.c.l.b16 %v1299
          %v1331 = vunpack.c.h.b16 %v1297
          %v1332 = vunpack.c.h.b16 %v1298
          %v1333 = vunpack.c.h.b16 %v1299
          %v1334 = vunpack.c.l.b16 %v1300
          %v1335 = vunpack.c.l.b16 %v1301
          %v1336 = vunpack.c.l.b16 %v1302
          %v1337 = vunpack.c.h.b16 %v1300
          %v1338 = vunpack.c.h.b16 %v1301
          %v1339 = vunpack.c.h.b16 %v1302
          %v1340 = vpack.c.b16 %v1317, %v1316
          %v1341 = vpack.c.b16 %v1318, %v1318
          %v1342 = vpack.c.b16 %v1320, %v1319
          %v1343 = vpack.c.b16 %v1321, %v1321
          %v1344 = vpack.c.b16 %v1323, %v1322
          %v1345 = vpack.c.b16 %v1324, %v1324
          %v1346 = vpack.c.b16 %v1326, %v1325
          %v1347 = vpack.c.b16 %v1327, %v1327
          %v1348 = vpack.c.b16 %v1329, %v1328
          %v1349 = vpack.c.b16 %v1330, %v1330
          %v1350 = vpack.c.b16 %v1332, %v1331
          %v1351 = vpack.c.b16 %v1333, %v1333
          %v1352 = vpack.c.b16 %v1335, %v1334
          %v1353 = vpack.c.b16 %v1336, %v1336
          %v1354 = vpack.c.b16 %v1338, %v1337
          %v1355 = vpack.c.b16 %v1339, %v1339
          %s1372 = smul.u32 %s1303, 6
          %s1373 = smul.addr %s1372, 4
          %s1374 = scalar_lea.vmem [#allocation3], %s1373
          %1375 = vst [vmem:[%s1374] sm:$0xff] %v1340
          %1376 = vst [vmem:[%s1374 + $0x8] sm:$0xf] %v1341
          %1377 = vst [vmem:[%s1374 + $0xc] sm:$0xff] %v1342
          %1378 = vst [vmem:[%s1374 + $0x14] sm:$0xf] %v1343
          %1379 = vst [vmem:[%s1374 + $0x18] sm:$0xff] %v1344
          %1380 = vst [vmem:[%s1374 + $0x20] sm:$0xf] %v1345
          %1381 = vst [vmem:[%s1374 + $0x24] sm:$0xff] %v1346
          %1382 = vst [vmem:[%s1374 + $0x2c] sm:$0xf] %v1347
          %1383 = vst [vmem:[%s1374 + $0x30] sm:$0xff] %v1348
          %1384 = vst [vmem:[%s1374 + $0x38] sm:$0xf] %v1349
          %1385 = vst [vmem:[%s1374 + $0x3c] sm:$0xff] %v1350
          %1386 = vst [vmem:[%s1374 + $0x44] sm:$0xf] %v1351
          %1387 = vst [vmem:[%s1374 + $0x48] sm:$0xff] %v1352
          %1388 = vst [vmem:[%s1374 + $0x50] sm:$0xf] %v1353
          %1389 = vst [vmem:[%s1374 + $0x54] sm:$0xff] %v1354
          %1390 = vst [vmem:[%s1374 + $0x5c] sm:$0xf] %v1355
        $region59: #{encoder_rnn_forward.1} parent=52 // pred_fallthru
          _
        %s1391 = smul.u32 %s933, 4
        %v1392 = vld [vmem:[#allocation2] sm:$0xff]
        %v1393 = vld [vmem:[#allocation2 + $0x8] sm:$0xff]
        %v1394 = vpack.c.bf16 %v1393, %v1392
        %v1395 = vld [vmem:[%s401] sm:$0xff]
        %v1396 = vld [vmem:[%s401 + $0x8] sm:$0xf]
        %v1397 = vld [vmem:[%s401 + $0xc] sm:$0xff]
        %v1398 = vld [vmem:[%s401 + $0x14] sm:$0xf]
        %v1399 = vld [vmem:[%s401 + $0x18] sm:$0xff]
        %v1400 = vld [vmem:[%s401 + $0x20] sm:$0xf]
        %v1401 = vld [vmem:[%s401 + $0x24] sm:$0xff]
        %v1402 = vld [vmem:[%s401 + $0x2c] sm:$0xf]
        %v1403 = vld [vmem:[%s401 + $0x30] sm:$0xff]
        %v1404 = vld [vmem:[%s401 + $0x38] sm:$0xf]
        %v1405 = vld [vmem:[%s401 + $0x3c] sm:$0xff]
        %v1406 = vld [vmem:[%s401 + $0x44] sm:$0xf]
        %v1407 = vld [vmem:[%s401 + $0x48] sm:$0xff]
        %v1408 = vld [vmem:[%s401 + $0x50] sm:$0xf]
        %v1409 = vld [vmem:[%s401 + $0x54] sm:$0xff]
        %v1410 = vld [vmem:[%s401 + $0x5c] sm:$0xf]
        %v1411 = vld [vmem:[%s401 + $0x60] sm:$0xff]
        %v1412 = vld [vmem:[%s401 + $0x68] sm:$0xf]
        %v1413 = vld [vmem:[%s401 + $0x6c] sm:$0xff]
        %v1414 = vld [vmem:[%s401 + $0x74] sm:$0xf]
        %v1415 = vld [vmem:[%s401 + $0x78] sm:$0xff]
        %v1416 = vld [vmem:[%s401 + $0x80] sm:$0xf]
        %v1417 = vld [vmem:[%s401 + $0x84] sm:$0xff]
        %v1418 = vld [vmem:[%s401 + $0x8c] sm:$0xf]
        %v1419 = vld [vmem:[%s401 + $0x90] sm:$0xff]
        %v1420 = vld [vmem:[%s401 + $0x98] sm:$0xf]
        %v1421 = vld [vmem:[%s401 + $0x9c] sm:$0xff]
        %v1422 = vld [vmem:[%s401 + $0xa4] sm:$0xf]
        %v1423 = vld [vmem:[%s401 + $0xa8] sm:$0xff]
        %v1424 = vld [vmem:[%s401 + $0xb0] sm:$0xf]
        %v1425 = vld [vmem:[%s401 + $0xb4] sm:$0xff]
        %v1426 = vld [vmem:[%s401 + $0xbc] sm:$0xf]
        %v1459 = vunpack.c.l.b16 %v1395
        %v1460 = vunpack.c.h.b16 %v1395
        %v1461 = vunpack.c.l.b16 %v1396
        %v1462 = vunpack.c.l.b16 %v1397
        %v1463 = vunpack.c.h.b16 %v1397
        %v1464 = vunpack.c.l.b16 %v1398
        %v1465 = vunpack.c.l.b16 %v1399
        %v1466 = vunpack.c.h.b16 %v1399
        %v1467 = vunpack.c.l.b16 %v1400
        %v1468 = vunpack.c.l.b16 %v1401
        %v1469 = vunpack.c.h.b16 %v1401
        %v1470 = vunpack.c.l.b16 %v1402
        %v1471 = vunpack.c.l.b16 %v1403
        %v1472 = vunpack.c.h.b16 %v1403
        %v1473 = vunpack.c.l.b16 %v1404
        %v1474 = vunpack.c.l.b16 %v1405
        %v1475 = vunpack.c.h.b16 %v1405
        %v1476 = vunpack.c.l.b16 %v1406
        %v1477 = vunpack.c.l.b16 %v1407
        %v1478 = vunpack.c.h.b16 %v1407
        %v1479 = vunpack.c.l.b16 %v1408
        %v1480 = vunpack.c.l.b16 %v1409
        %v1481 = vunpack.c.h.b16 %v1409
        %v1482 = vunpack.c.l.b16 %v1410
        %v1483 = vunpack.c.l.b16 %v1411
        %v1484 = vunpack.c.h.b16 %v1411
        %v1485 = vunpack.c.l.b16 %v1412
        %v1486 = vunpack.c.l.b16 %v1413
        %v1487 = vunpack.c.h.b16 %v1413
        %v1488 = vunpack.c.l.b16 %v1414
        %v1489 = vunpack.c.l.b16 %v1415
        %v1490 = vunpack.c.h.b16 %v1415
        %v1491 = vunpack.c.l.b16 %v1416
        %v1492 = vunpack.c.l.b16 %v1417
        %v1493 = vunpack.c.h.b16 %v1417
        %v1494 = vunpack.c.l.b16 %v1418
        %v1495 = vunpack.c.l.b16 %v1419
        %v1496 = vunpack.c.h.b16 %v1419
        %v1497 = vunpack.c.l.b16 %v1420
        %v1498 = vunpack.c.l.b16 %v1421
        %v1499 = vunpack.c.h.b16 %v1421
        %v1500 = vunpack.c.l.b16 %v1422
        %v1501 = vunpack.c.l.b16 %v1423
        %v1502 = vunpack.c.h.b16 %v1423
        %v1503 = vunpack.c.l.b16 %v1424
        %v1504 = vunpack.c.l.b16 %v1425
        %v1505 = vunpack.c.h.b16 %v1425
        %v1506 = vunpack.c.l.b16 %v1426
        %v1507 = vpack.c.b16 %v1462, %v1459
        %v1508 = vpack.c.b16 %v1463, %v1460
        %v1509 = vpack.c.b16 %v1464, %v1461
        %v1510 = vpack.c.b16 %v1468, %v1465
        %v1511 = vpack.c.b16 %v1469, %v1466
        %v1512 = vpack.c.b16 %v1470, %v1467
        %v1513 = vpack.c.b16 %v1474, %v1471
        %v1514 = vpack.c.b16 %v1475, %v1472
        %v1515 = vpack.c.b16 %v1476, %v1473
        %v1516 = vpack.c.b16 %v1480, %v1477
        %v1517 = vpack.c.b16 %v1481, %v1478
        %v1518 = vpack.c.b16 %v1482, %v1479
        %v1519 = vpack.c.b16 %v1486, %v1483
        %v1520 = vpack.c.b16 %v1487, %v1484
        %v1521 = vpack.c.b16 %v1488, %v1485
        %v1522 = vpack.c.b16 %v1492, %v1489
        %v1523 = vpack.c.b16 %v1493, %v1490
        %v1524 = vpack.c.b16 %v1494, %v1491
        %v1525 = vpack.c.b16 %v1498, %v1495
        %v1526 = vpack.c.b16 %v1499, %v1496
        %v1527 = vpack.c.b16 %v1500, %v1497
        %v1528 = vpack.c.b16 %v1504, %v1501
        %v1529 = vpack.c.b16 %v1505, %v1502
        %v1530 = vpack.c.b16 %v1506, %v1503
        %1555 = vmatprep.subr.bf16.mxu0 %v1529
        %1556 = vmatpush1.bf16.msra.mxu0 %v1528
        %1557 = vmatprep.subr.bf16.mxu0 %v1526
        %1558 = vmatpush1.bf16.msra.mxu0 %v1525
        %1559 = vmatprep.subr.bf16.mxu0 %v1523
        %1560 = vmatpush1.bf16.msra.mxu0 %v1522
        %1561 = vmatprep.subr.bf16.mxu0 %v1520
        %1562 = vmatpush1.bf16.msra.mxu0 %v1519
        %1563 = vmatprep.subr.bf16.mxu0 %v1517
        %1564 = vmatpush1.bf16.msra.mxu0 %v1516
        %1565 = vmatprep.subr.bf16.mxu0 %v1514
        %1566 = vmatpush1.bf16.msra.mxu0 %v1513
        %1567 = vmatprep.subr.bf16.mxu0 %v1511
        %1568 = vmatpush1.bf16.msra.mxu0 %v1510
        %1569 = vmatprep.subr.bf16.mxu0 %v1508
        %1570 = vmatpush1.bf16.msra.mxu0 %v1507
        %1571 = vmatprep.subr.bf16.mxu0 0
        %1572 = vmatpush2.bf16.msra.mxu0 0
        %1573 = vmatprep.subr.bf16.mxu0 0
        %1574 = vmatpush2.bf16.msra.mxu0 0
        %1575 = vmatprep.subr.bf16.mxu0 0
        %1576 = vmatpush2.bf16.msra.mxu0 0
        %1577 = vmatprep.subr.bf16.mxu0 0
        %1578 = vmatpush2.bf16.msra.mxu0 0
        %1579 = vmatprep.subr.bf16.mxu0 0
        %1580 = vmatpush2.bf16.msra.mxu0 0
        %1581 = vmatprep.subr.bf16.mxu0 0
        %1582 = vmatpush2.bf16.msra.mxu0 0
        %1583 = vmatprep.subr.bf16.mxu0 0
        %1584 = vmatpush2.bf16.msra.mxu0 0
        %1585 = vmatprep.subr.bf16.mxu0 0
        %1586 = vmatpush2.bf16.msra.mxu0 0
        %1587 = vmatprep.mubr.bf16.mxu0 0
        %1588 = vmatmul.mubr.bf16.gmra.mxu0 %v1394
        %v1589 = vpop.f32.mrf.mxu0
        %v1590 = vadd.f32 0.0, %v1589
        %v1591 = vpop.f32.mrf.mxu0
        %v1592 = vadd.f32 0.0, %v1591
        %v1593 = vpop.f32.mrf.mxu0
        %v1594 = vadd.f32 0.0, %v1593
        %v1595 = vpop.f32.mrf.mxu0
        %v1596 = vadd.f32 0.0, %v1595
        %1597 = vdwg.mxu0
        %1598 = vmatprep.subr.bf16.mxu0 0
        %1599 = vmatpush1.bf16.msra.mxu0 %v1530
        %1600 = vmatprep.subr.bf16.mxu0 0
        %1601 = vmatpush1.bf16.msra.mxu0 %v1527
        %1602 = vmatprep.subr.bf16.mxu0 0
        %1603 = vmatpush1.bf16.msra.mxu0 %v1524
        %1604 = vmatprep.subr.bf16.mxu0 0
        %1605 = vmatpush1.bf16.msra.mxu0 %v1521
        %1606 = vmatprep.subr.bf16.mxu0 0
        %1607 = vmatpush1.bf16.msra.mxu0 %v1518
        %1608 = vmatprep.subr.bf16.mxu0 0
        %1609 = vmatpush1.bf16.msra.mxu0 %v1515
        %1610 = vmatprep.subr.bf16.mxu0 0
        %1611 = vmatpush1.bf16.msra.mxu0 %v1512
        %1612 = vmatprep.subr.bf16.mxu0 0
        %1613 = vmatpush1.bf16.msra.mxu0 %v1509
        %1614 = vmatprep.subr.bf16.mxu0 0
        %1615 = vmatpush2.bf16.msra.mxu0 0
        %1616 = vmatprep.subr.bf16.mxu0 0
        %1617 = vmatpush2.bf16.msra.mxu0 0
        %1618 = vmatprep.subr.bf16.mxu0 0
        %1619 = vmatpush2.bf16.msra.mxu0 0
        %1620 = vmatprep.subr.bf16.mxu0 0
        %1621 = vmatpush2.bf16.msra.mxu0 0
        %1622 = vmatprep.subr.bf16.mxu0 0
        %1623 = vmatpush2.bf16.msra.mxu0 0
        %1624 = vmatprep.subr.bf16.mxu0 0
        %1625 = vmatpush2.bf16.msra.mxu0 0
        %1626 = vmatprep.subr.bf16.mxu0 0
        %1627 = vmatpush2.bf16.msra.mxu0 0
        %1628 = vmatprep.subr.bf16.mxu0 0
        %1629 = vmatpush2.bf16.msra.mxu0 0
        %1630 = vmatprep.mubr.bf16.mxu0 0
        %1631 = vmatmul.mubr.bf16.gmra.mxu0 %v1394
        %v1632 = vpop.f32.mrf.mxu0
        %v1633 = vadd.f32 0.0, %v1632
        %v1634 = vpop.f32.mrf.mxu0
        %v1635 = vpop.f32.mrf.mxu0
        %v1636 = vadd.f32 0.0, %v1635
        %v1637 = vpop.f32.mrf.mxu0
        %1638 = vdwg.mxu0
        %s1639 = smul.u32 %s1391, 6
        %s1640 = smul.addr %s1639, 4
        %s1641 = scalar_lea.vmem [#allocation3], %s1640
        %v1642 = vld [vmem:[%s1641] sm:$0xff]
        %v1643 = vld [vmem:[%s1641 + $0x8] sm:$0xf]
        %v1644 = vld [vmem:[%s1641 + $0xc] sm:$0xff]
        %v1645 = vld [vmem:[%s1641 + $0x14] sm:$0xf]
        %v1646 = vunpack.c.l.bf16 %v1642
        %v1647 = vunpack.c.h.bf16 %v1642
        %v1648 = vunpack.c.l.bf16 %v1644
        %v1649 = vunpack.c.h.bf16 %v1644
        %v1650 = vadd.f32 %v1646, %v1590
        %v1651 = vadd.f32 %v1647, %v1592
        %v1652 = vadd.f32 %v1648, %v1594
        %v1653 = vadd.f32 %v1649, %v1596
        %v1654 = vxor.u32 %v1650, 2147483648
        %v1655 = vxor.u32 %v1651, 2147483648
        %v1656 = vxor.u32 %v1652, 2147483648
        %v1657 = vxor.u32 %v1653, 2147483648
        %v1658 = vmul.f32 %v1654, 1.442695
        %v1659 = vpow.pop %v1658
        %v1660 = vmul.f32 %v1655, 1.442695
        %v1661 = vpow.pop %v1660
        %v1662 = vmul.f32 %v1656, 1.442695
        %v1663 = vpow.pop %v1662
        %v1664 = vmul.f32 %v1657, 1.442695
        %v1665 = vpow.pop %v1664
        %v1666 = vadd.f32 %v1659, 1.0
        %v1667 = vadd.f32 %v1661, 1.0
        %v1668 = vadd.f32 %v1663, 1.0
        %v1669 = vadd.f32 %v1665, 1.0
        %v1670 = vrcp.pop %v1666
        %v1671 = vmul.f32 1.0, %v1670
        %v1672 = vrcp.pop %v1667
        %v1673 = vmul.f32 1.0, %v1672
        %v1674 = vrcp.pop %v1668
        %v1675 = vmul.f32 1.0, %v1674
        %v1676 = vrcp.pop %v1669
        %v1677 = vmul.f32 1.0, %v1676
        %v1678 = vadd.f32 %v1633, %v914
        %v1679 = vadd.f32 %v1636, %v914
        %v1680 = vmul.f32 %v1671, %v1678
        %v1681 = vmul.f32 %v1675, %v1679
        %v1682 = vunpack.c.l.bf16 %v1643
        %v1683 = vunpack.c.l.bf16 %v1645
        %v1684 = vadd.f32 %v1682, %v1680
        %v1685 = vadd.f32 %v1683, %v1681
        %v1686 = vtanh.pop %v1684
        %v1687 = vtanh.pop %v1685
        %v1688 = vsub.f32 1.0, %v1673
        %v1689 = vsub.f32 1.0, %v1677
        %v1690 = vmul.f32 %v1688, %v1686
        %v1691 = vmul.f32 %v1689, %v1687
        %v1692 = vmul.f32 %v1673, %v1392
        %v1693 = vmul.f32 %v1677, %v1393
        %v1694 = vadd.f32 %v1690, %v1692
        %v1695 = vadd.f32 %v1691, %v1693
        %1696 = vst [vmem:[#allocation2] sm:$0xff] %v1694
        %1697 = vst [vmem:[#allocation2 + $0x8] sm:$0xff] %v1695
        %v1698 = vpack.c.bf16 %v1695, %v1694
        %s1699 = smul.u32 %s917, 4
        %v1701 = vunpack.c.l.b16 %v1698
        %v1702 = vunpack.c.h.b16 %v1698
        %v1703 = vpack.c.b16 %v1701, %v1701
        %v1704 = vpack.c.b16 %v1702, %v1702
        %s1707 = smul.u32 %s1699, 2
        %s1708 = smul.addr %s1707, 4
        %s1709 = scalar_lea.vmem %s413, %s1708
        %1710 = vst [vmem:[%s1709] sm:$0xf] %v1703
        %1711 = vst [vmem:[%s1709 + $0x4] sm:$0xf] %v1704
        %v1712 = vld [vmem:[#allocation2] sm:$0xff]
        %v1713 = vld [vmem:[#allocation2 + $0x8] sm:$0xff]
        %v1714 = vpack.c.bf16 %v1713, %v1712
        %v1715 = vld [vmem:[%s401] sm:$0xff]
        %v1716 = vld [vmem:[%s401 + $0x8] sm:$0xf]
        %v1717 = vld [vmem:[%s401 + $0xc] sm:$0xff]
        %v1718 = vld [vmem:[%s401 + $0x14] sm:$0xf]
        %v1719 = vld [vmem:[%s401 + $0x18] sm:$0xff]
        %v1720 = vld [vmem:[%s401 + $0x20] sm:$0xf]
        %v1721 = vld [vmem:[%s401 + $0x24] sm:$0xff]
        %v1722 = vld [vmem:[%s401 + $0x2c] sm:$0xf]
        %v1723 = vld [vmem:[%s401 + $0x30] sm:$0xff]
        %v1724 = vld [vmem:[%s401 + $0x38] sm:$0xf]
        %v1725 = vld [vmem:[%s401 + $0x3c] sm:$0xff]
        %v1726 = vld [vmem:[%s401 + $0x44] sm:$0xf]
        %v1727 = vld [vmem:[%s401 + $0x48] sm:$0xff]
        %v1728 = vld [vmem:[%s401 + $0x50] sm:$0xf]
        %v1729 = vld [vmem:[%s401 + $0x54] sm:$0xff]
        %v1730 = vld [vmem:[%s401 + $0x5c] sm:$0xf]
        %v1731 = vld [vmem:[%s401 + $0x60] sm:$0xff]
        %v1732 = vld [vmem:[%s401 + $0x68] sm:$0xf]
        %v1733 = vld [vmem:[%s401 + $0x6c] sm:$0xff]
        %v1734 = vld [vmem:[%s401 + $0x74] sm:$0xf]
        %v1735 = vld [vmem:[%s401 + $0x78] sm:$0xff]
        %v1736 = vld [vmem:[%s401 + $0x80] sm:$0xf]
        %v1737 = vld [vmem:[%s401 + $0x84] sm:$0xff]
        %v1738 = vld [vmem:[%s401 + $0x8c] sm:$0xf]
        %v1739 = vld [vmem:[%s401 + $0x90] sm:$0xff]
        %v1740 = vld [vmem:[%s401 + $0x98] sm:$0xf]
        %v1741 = vld [vmem:[%s401 + $0x9c] sm:$0xff]
        %v1742 = vld [vmem:[%s401 + $0xa4] sm:$0xf]
        %v1743 = vld [vmem:[%s401 + $0xa8] sm:$0xff]
        %v1744 = vld [vmem:[%s401 + $0xb0] sm:$0xf]
        %v1745 = vld [vmem:[%s401 + $0xb4] sm:$0xff]
        %v1746 = vld [vmem:[%s401 + $0xbc] sm:$0xf]
        %v1779 = vunpack.c.l.b16 %v1715
        %v1780 = vunpack.c.h.b16 %v1715
        %v1781 = vunpack.c.l.b16 %v1716
        %v1782 = vunpack.c.l.b16 %v1717
        %v1783 = vunpack.c.h.b16 %v1717
        %v1784 = vunpack.c.l.b16 %v1718
        %v1785 = vunpack.c.l.b16 %v1719
        %v1786 = vunpack.c.h.b16 %v1719
        %v1787 = vunpack.c.l.b16 %v1720
        %v1788 = vunpack.c.l.b16 %v1721
        %v1789 = vunpack.c.h.b16 %v1721
        %v1790 = vunpack.c.l.b16 %v1722
        %v1791 = vunpack.c.l.b16 %v1723
        %v1792 = vunpack.c.h.b16 %v1723
        %v1793 = vunpack.c.l.b16 %v1724
        %v1794 = vunpack.c.l.b16 %v1725
        %v1795 = vunpack.c.h.b16 %v1725
        %v1796 = vunpack.c.l.b16 %v1726
        %v1797 = vunpack.c.l.b16 %v1727
        %v1798 = vunpack.c.h.b16 %v1727
        %v1799 = vunpack.c.l.b16 %v1728
        %v1800 = vunpack.c.l.b16 %v1729
        %v1801 = vunpack.c.h.b16 %v1729
        %v1802 = vunpack.c.l.b16 %v1730
        %v1803 = vunpack.c.l.b16 %v1731
        %v1804 = vunpack.c.h.b16 %v1731
        %v1805 = vunpack.c.l.b16 %v1732
        %v1806 = vunpack.c.l.b16 %v1733
        %v1807 = vunpack.c.h.b16 %v1733
        %v1808 = vunpack.c.l.b16 %v1734
        %v1809 = vunpack.c.l.b16 %v1735
        %v1810 = vunpack.c.h.b16 %v1735
        %v1811 = vunpack.c.l.b16 %v1736
        %v1812 = vunpack.c.l.b16 %v1737
        %v1813 = vunpack.c.h.b16 %v1737
        %v1814 = vunpack.c.l.b16 %v1738
        %v1815 = vunpack.c.l.b16 %v1739
        %v1816 = vunpack.c.h.b16 %v1739
        %v1817 = vunpack.c.l.b16 %v1740
        %v1818 = vunpack.c.l.b16 %v1741
        %v1819 = vunpack.c.h.b16 %v1741
        %v1820 = vunpack.c.l.b16 %v1742
        %v1821 = vunpack.c.l.b16 %v1743
        %v1822 = vunpack.c.h.b16 %v1743
        %v1823 = vunpack.c.l.b16 %v1744
        %v1824 = vunpack.c.l.b16 %v1745
        %v1825 = vunpack.c.h.b16 %v1745
        %v1826 = vunpack.c.l.b16 %v1746
        %v1827 = vpack.c.b16 %v1782, %v1779
        %v1828 = vpack.c.b16 %v1783, %v1780
        %v1829 = vpack.c.b16 %v1784, %v1781
        %v1830 = vpack.c.b16 %v1788, %v1785
        %v1831 = vpack.c.b16 %v1789, %v1786
        %v1832 = vpack.c.b16 %v1790, %v1787
        %v1833 = vpack.c.b16 %v1794, %v1791
        %v1834 = vpack.c.b16 %v1795, %v1792
        %v1835 = vpack.c.b16 %v1796, %v1793
        %v1836 = vpack.c.b16 %v1800, %v1797
        %v1837 = vpack.c.b16 %v1801, %v1798
        %v1838 = vpack.c.b16 %v1802, %v1799
        %v1839 = vpack.c.b16 %v1806, %v1803
        %v1840 = vpack.c.b16 %v1807, %v1804
        %v1841 = vpack.c.b16 %v1808, %v1805
        %v1842 = vpack.c.b16 %v1812, %v1809
        %v1843 = vpack.c.b16 %v1813, %v1810
        %v1844 = vpack.c.b16 %v1814, %v1811
        %v1845 = vpack.c.b16 %v1818, %v1815
        %v1846 = vpack.c.b16 %v1819, %v1816
        %v1847 = vpack.c.b16 %v1820, %v1817
        %v1848 = vpack.c.b16 %v1824, %v1821
        %v1849 = vpack.c.b16 %v1825, %v1822
        %v1850 = vpack.c.b16 %v1826, %v1823
        %1875 = vmatprep.subr.bf16.mxu0 %v1849
        %1876 = vmatpush1.bf16.msra.mxu0 %v1848
        %1877 = vmatprep.subr.bf16.mxu0 %v1846
        %1878 = vmatpush1.bf16.msra.mxu0 %v1845
        %1879 = vmatprep.subr.bf16.mxu0 %v1843
        %1880 = vmatpush1.bf16.msra.mxu0 %v1842
        %1881 = vmatprep.subr.bf16.mxu0 %v1840
        %1882 = vmatpush1.bf16.msra.mxu0 %v1839
        %1883 = vmatprep.subr.bf16.mxu0 %v1837
        %1884 = vmatpush1.bf16.msra.mxu0 %v1836
        %1885 = vmatprep.subr.bf16.mxu0 %v1834
        %1886 = vmatpush1.bf16.msra.mxu0 %v1833
        %1887 = vmatprep.subr.bf16.mxu0 %v1831
        %1888 = vmatpush1.bf16.msra.mxu0 %v1830
        %1889 = vmatprep.subr.bf16.mxu0 %v1828
        %1890 = vmatpush1.bf16.msra.mxu0 %v1827
        %1891 = vmatprep.subr.bf16.mxu0 0
        %1892 = vmatpush2.bf16.msra.mxu0 0
        %1893 = vmatprep.subr.bf16.mxu0 0
        %1894 = vmatpush2.bf16.msra.mxu0 0
        %1895 = vmatprep.subr.bf16.mxu0 0
        %1896 = vmatpush2.bf16.msra.mxu0 0
        %1897 = vmatprep.subr.bf16.mxu0 0
        %1898 = vmatpush2.bf16.msra.mxu0 0
        %1899 = vmatprep.subr.bf16.mxu0 0
        %1900 = vmatpush2.bf16.msra.mxu0 0
        %1901 = vmatprep.subr.bf16.mxu0 0
        %1902 = vmatpush2.bf16.msra.mxu0 0
        %1903 = vmatprep.subr.bf16.mxu0 0
        %1904 = vmatpush2.bf16.msra.mxu0 0
        %1905 = vmatprep.subr.bf16.mxu0 0
        %1906 = vmatpush2.bf16.msra.mxu0 0
        %1907 = vmatprep.mubr.bf16.mxu0 0
        %1908 = vmatmul.mubr.bf16.gmra.mxu0 %v1714
        %v1909 = vpop.f32.mrf.mxu0
        %v1910 = vadd.f32 0.0, %v1909
        %v1911 = vpop.f32.mrf.mxu0
        %v1912 = vadd.f32 0.0, %v1911
        %v1913 = vpop.f32.mrf.mxu0
        %v1914 = vadd.f32 0.0, %v1913
        %v1915 = vpop.f32.mrf.mxu0
        %v1916 = vadd.f32 0.0, %v1915
        %1917 = vdwg.mxu0
        %1918 = vmatprep.subr.bf16.mxu0 0
        %1919 = vmatpush1.bf16.msra.mxu0 %v1850
        %1920 = vmatprep.subr.bf16.mxu0 0
        %1921 = vmatpush1.bf16.msra.mxu0 %v1847
        %1922 = vmatprep.subr.bf16.mxu0 0
        %1923 = vmatpush1.bf16.msra.mxu0 %v1844
        %1924 = vmatprep.subr.bf16.mxu0 0
        %1925 = vmatpush1.bf16.msra.mxu0 %v1841
        %1926 = vmatprep.subr.bf16.mxu0 0
        %1927 = vmatpush1.bf16.msra.mxu0 %v1838
        %1928 = vmatprep.subr.bf16.mxu0 0
        %1929 = vmatpush1.bf16.msra.mxu0 %v1835
        %1930 = vmatprep.subr.bf16.mxu0 0
        %1931 = vmatpush1.bf16.msra.mxu0 %v1832
        %1932 = vmatprep.subr.bf16.mxu0 0
        %1933 = vmatpush1.bf16.msra.mxu0 %v1829
        %1934 = vmatprep.subr.bf16.mxu0 0
        %1935 = vmatpush2.bf16.msra.mxu0 0
        %1936 = vmatprep.subr.bf16.mxu0 0
        %1937 = vmatpush2.bf16.msra.mxu0 0
        %1938 = vmatprep.subr.bf16.mxu0 0
        %1939 = vmatpush2.bf16.msra.mxu0 0
        %1940 = vmatprep.subr.bf16.mxu0 0
        %1941 = vmatpush2.bf16.msra.mxu0 0
        %1942 = vmatprep.subr.bf16.mxu0 0
        %1943 = vmatpush2.bf16.msra.mxu0 0
        %1944 = vmatprep.subr.bf16.mxu0 0
        %1945 = vmatpush2.bf16.msra.mxu0 0
        %1946 = vmatprep.subr.bf16.mxu0 0
        %1947 = vmatpush2.bf16.msra.mxu0 0
        %1948 = vmatprep.subr.bf16.mxu0 0
        %1949 = vmatpush2.bf16.msra.mxu0 0
        %1950 = vmatprep.mubr.bf16.mxu0 0
        %1951 = vmatmul.mubr.bf16.gmra.mxu0 %v1714
        %v1952 = vpop.f32.mrf.mxu0
        %v1953 = vadd.f32 0.0, %v1952
        %v1954 = vpop.f32.mrf.mxu0
        %v1955 = vpop.f32.mrf.mxu0
        %v1956 = vadd.f32 0.0, %v1955
        %v1957 = vpop.f32.mrf.mxu0
        %1958 = vdwg.mxu0
        %s1959 = sadd.s32 %s1391, 1
        %s1960 = smul.u32 %s1959, 6
        %s1961 = smul.addr %s1960, 4
        %s1962 = scalar_lea.vmem [#allocation3], %s1961
        %v1963 = vld [vmem:[%s1962] sm:$0xff]
        %v1964 = vld [vmem:[%s1962 + $0x8] sm:$0xf]
        %v1965 = vld [vmem:[%s1962 + $0xc] sm:$0xff]
        %v1966 = vld [vmem:[%s1962 + $0x14] sm:$0xf]
        %v1967 = vunpack.c.l.bf16 %v1963
        %v1968 = vunpack.c.h.bf16 %v1963
        %v1969 = vunpack.c.l.bf16 %v1965
        %v1970 = vunpack.c.h.bf16 %v1965
        %v1971 = vadd.f32 %v1967, %v1910
        %v1972 = vadd.f32 %v1968, %v1912
        %v1973 = vadd.f32 %v1969, %v1914
        %v1974 = vadd.f32 %v1970, %v1916
        %v1975 = vxor.u32 %v1971, 2147483648
        %v1976 = vxor.u32 %v1972, 2147483648
        %v1977 = vxor.u32 %v1973, 2147483648
        %v1978 = vxor.u32 %v1974, 2147483648
        %v1979 = vmul.f32 %v1975, 1.442695
        %v1980 = vpow.pop %v1979
        %v1981 = vmul.f32 %v1976, 1.442695
        %v1982 = vpow.pop %v1981
        %v1983 = vmul.f32 %v1977, 1.442695
        %v1984 = vpow.pop %v1983
        %v1985 = vmul.f32 %v1978, 1.442695
        %v1986 = vpow.pop %v1985
        %v1987 = vadd.f32 %v1980, 1.0
        %v1988 = vadd.f32 %v1982, 1.0
        %v1989 = vadd.f32 %v1984, 1.0
        %v1990 = vadd.f32 %v1986, 1.0
        %v1991 = vrcp.pop %v1987
        %v1992 = vmul.f32 1.0, %v1991
        %v1993 = vrcp.pop %v1988
        %v1994 = vmul.f32 1.0, %v1993
        %v1995 = vrcp.pop %v1989
        %v1996 = vmul.f32 1.0, %v1995
        %v1997 = vrcp.pop %v1990
        %v1998 = vmul.f32 1.0, %v1997
        %v1999 = vadd.f32 %v1953, %v914
        %v2000 = vadd.f32 %v1956, %v914
        %v2001 = vmul.f32 %v1992, %v1999
        %v2002 = vmul.f32 %v1996, %v2000
        %v2003 = vunpack.c.l.bf16 %v1964
        %v2004 = vunpack.c.l.bf16 %v1966
        %v2005 = vadd.f32 %v2003, %v2001
        %v2006 = vadd.f32 %v2004, %v2002
        %v2007 = vtanh.pop %v2005
        %v2008 = vtanh.pop %v2006
        %v2009 = vsub.f32 1.0, %v1994
        %v2010 = vsub.f32 1.0, %v1998
        %v2011 = vmul.f32 %v2009, %v2007
        %v2012 = vmul.f32 %v2010, %v2008
        %v2013 = vmul.f32 %v1994, %v1712
        %v2014 = vmul.f32 %v1998, %v1713
        %v2015 = vadd.f32 %v2011, %v2013
        %v2016 = vadd.f32 %v2012, %v2014
        %2017 = vst [vmem:[#allocation2] sm:$0xff] %v2015
        %2018 = vst [vmem:[#allocation2 + $0x8] sm:$0xff] %v2016
        %v2019 = vpack.c.bf16 %v2016, %v2015
        %s2020 = sadd.s32 %s1699, 1
        %v2022 = vunpack.c.l.b16 %v2019
        %v2023 = vunpack.c.h.b16 %v2019
        %v2024 = vpack.c.b16 %v2022, %v2022
        %v2025 = vpack.c.b16 %v2023, %v2023
        %s2028 = smul.u32 %s2020, 2
        %s2029 = smul.addr %s2028, 4
        %s2030 = scalar_lea.vmem %s413, %s2029
        %2031 = vst [vmem:[%s2030] sm:$0xf] %v2024
        %2032 = vst [vmem:[%s2030 + $0x4] sm:$0xf] %v2025
        %v2033 = vld [vmem:[#allocation2] sm:$0xff]
        %v2034 = vld [vmem:[#allocation2 + $0x8] sm:$0xff]
        %v2035 = vpack.c.bf16 %v2034, %v2033
        %v2036 = vld [vmem:[%s401] sm:$0xff]
        %v2037 = vld [vmem:[%s401 + $0x8] sm:$0xf]
        %v2038 = vld [vmem:[%s401 + $0xc] sm:$0xff]
        %v2039 = vld [vmem:[%s401 + $0x14] sm:$0xf]
        %v2040 = vld [vmem:[%s401 + $0x18] sm:$0xff]
        %v2041 = vld [vmem:[%s401 + $0x20] sm:$0xf]
        %v2042 = vld [vmem:[%s401 + $0x24] sm:$0xff]
        %v2043 = vld [vmem:[%s401 + $0x2c] sm:$0xf]
        %v2044 = vld [vmem:[%s401 + $0x30] sm:$0xff]
        %v2045 = vld [vmem:[%s401 + $0x38] sm:$0xf]
        %v2046 = vld [vmem:[%s401 + $0x3c] sm:$0xff]
        %v2047 = vld [vmem:[%s401 + $0x44] sm:$0xf]
        %v2048 = vld [vmem:[%s401 + $0x48] sm:$0xff]
        %v2049 = vld [vmem:[%s401 + $0x50] sm:$0xf]
        %v2050 = vld [vmem:[%s401 + $0x54] sm:$0xff]
        %v2051 = vld [vmem:[%s401 + $0x5c] sm:$0xf]
        %v2052 = vld [vmem:[%s401 + $0x60] sm:$0xff]
        %v2053 = vld [vmem:[%s401 + $0x68] sm:$0xf]
        %v2054 = vld [vmem:[%s401 + $0x6c] sm:$0xff]
        %v2055 = vld [vmem:[%s401 + $0x74] sm:$0xf]
        %v2056 = vld [vmem:[%s401 + $0x78] sm:$0xff]
        %v2057 = vld [vmem:[%s401 + $0x80] sm:$0xf]
        %v2058 = vld [vmem:[%s401 + $0x84] sm:$0xff]
        %v2059 = vld [vmem:[%s401 + $0x8c] sm:$0xf]
        %v2060 = vld [vmem:[%s401 + $0x90] sm:$0xff]
        %v2061 = vld [vmem:[%s401 + $0x98] sm:$0xf]
        %v2062 = vld [vmem:[%s401 + $0x9c] sm:$0xff]
        %v2063 = vld [vmem:[%s401 + $0xa4] sm:$0xf]
        %v2064 = vld [vmem:[%s401 + $0xa8] sm:$0xff]
        %v2065 = vld [vmem:[%s401 + $0xb0] sm:$0xf]
        %v2066 = vld [vmem:[%s401 + $0xb4] sm:$0xff]
        %v2067 = vld [vmem:[%s401 + $0xbc] sm:$0xf]
        %v2100 = vunpack.c.l.b16 %v2036
        %v2101 = vunpack.c.h.b16 %v2036
        %v2102 = vunpack.c.l.b16 %v2037
        %v2103 = vunpack.c.l.b16 %v2038
        %v2104 = vunpack.c.h.b16 %v2038
        %v2105 = vunpack.c.l.b16 %v2039
        %v2106 = vunpack.c.l.b16 %v2040
        %v2107 = vunpack.c.h.b16 %v2040
        %v2108 = vunpack.c.l.b16 %v2041
        %v2109 = vunpack.c.l.b16 %v2042
        %v2110 = vunpack.c.h.b16 %v2042
        %v2111 = vunpack.c.l.b16 %v2043
        %v2112 = vunpack.c.l.b16 %v2044
        %v2113 = vunpack.c.h.b16 %v2044
        %v2114 = vunpack.c.l.b16 %v2045
        %v2115 = vunpack.c.l.b16 %v2046
        %v2116 = vunpack.c.h.b16 %v2046
        %v2117 = vunpack.c.l.b16 %v2047
        %v2118 = vunpack.c.l.b16 %v2048
        %v2119 = vunpack.c.h.b16 %v2048
        %v2120 = vunpack.c.l.b16 %v2049
        %v2121 = vunpack.c.l.b16 %v2050
        %v2122 = vunpack.c.h.b16 %v2050
        %v2123 = vunpack.c.l.b16 %v2051
        %v2124 = vunpack.c.l.b16 %v2052
        %v2125 = vunpack.c.h.b16 %v2052
        %v2126 = vunpack.c.l.b16 %v2053
        %v2127 = vunpack.c.l.b16 %v2054
        %v2128 = vunpack.c.h.b16 %v2054
        %v2129 = vunpack.c.l.b16 %v2055
        %v2130 = vunpack.c.l.b16 %v2056
        %v2131 = vunpack.c.h.b16 %v2056
        %v2132 = vunpack.c.l.b16 %v2057
        %v2133 = vunpack.c.l.b16 %v2058
        %v2134 = vunpack.c.h.b16 %v2058
        %v2135 = vunpack.c.l.b16 %v2059
        %v2136 = vunpack.c.l.b16 %v2060
        %v2137 = vunpack.c.h.b16 %v2060
        %v2138 = vunpack.c.l.b16 %v2061
        %v2139 = vunpack.c.l.b16 %v2062
        %v2140 = vunpack.c.h.b16 %v2062
        %v2141 = vunpack.c.l.b16 %v2063
        %v2142 = vunpack.c.l.b16 %v2064
        %v2143 = vunpack.c.h.b16 %v2064
        %v2144 = vunpack.c.l.b16 %v2065
        %v2145 = vunpack.c.l.b16 %v2066
        %v2146 = vunpack.c.h.b16 %v2066
        %v2147 = vunpack.c.l.b16 %v2067
        %v2148 = vpack.c.b16 %v2103, %v2100
        %v2149 = vpack.c.b16 %v2104, %v2101
        %v2150 = vpack.c.b16 %v2105, %v2102
        %v2151 = vpack.c.b16 %v2109, %v2106
        %v2152 = vpack.c.b16 %v2110, %v2107
        %v2153 = vpack.c.b16 %v2111, %v2108
        %v2154 = vpack.c.b16 %v2115, %v2112
        %v2155 = vpack.c.b16 %v2116, %v2113
        %v2156 = vpack.c.b16 %v2117, %v2114
        %v2157 = vpack.c.b16 %v2121, %v2118
        %v2158 = vpack.c.b16 %v2122, %v2119
        %v2159 = vpack.c.b16 %v2123, %v2120
        %v2160 = vpack.c.b16 %v2127, %v2124
        %v2161 = vpack.c.b16 %v2128, %v2125
        %v2162 = vpack.c.b16 %v2129, %v2126
        %v2163 = vpack.c.b16 %v2133, %v2130
        %v2164 = vpack.c.b16 %v2134, %v2131
        %v2165 = vpack.c.b16 %v2135, %v2132
        %v2166 = vpack.c.b16 %v2139, %v2136
        %v2167 = vpack.c.b16 %v2140, %v2137
        %v2168 = vpack.c.b16 %v2141, %v2138
        %v2169 = vpack.c.b16 %v2145, %v2142
        %v2170 = vpack.c.b16 %v2146, %v2143
        %v2171 = vpack.c.b16 %v2147, %v2144
        %2196 = vmatprep.subr.bf16.mxu0 %v2170
        %2197 = vmatpush1.bf16.msra.mxu0 %v2169
        %2198 = vmatprep.subr.bf16.mxu0 %v2167
        %2199 = vmatpush1.bf16.msra.mxu0 %v2166
        %2200 = vmatprep.subr.bf16.mxu0 %v2164
        %2201 = vmatpush1.bf16.msra.mxu0 %v2163
        %2202 = vmatprep.subr.bf16.mxu0 %v2161
        %2203 = vmatpush1.bf16.msra.mxu0 %v2160
        %2204 = vmatprep.subr.bf16.mxu0 %v2158
        %2205 = vmatpush1.bf16.msra.mxu0 %v2157
        %2206 = vmatprep.subr.bf16.mxu0 %v2155
        %2207 = vmatpush1.bf16.msra.mxu0 %v2154
        %2208 = vmatprep.subr.bf16.mxu0 %v2152
        %2209 = vmatpush1.bf16.msra.mxu0 %v2151
        %2210 = vmatprep.subr.bf16.mxu0 %v2149
        %2211 = vmatpush1.bf16.msra.mxu0 %v2148
        %2212 = vmatprep.subr.bf16.mxu0 0
        %2213 = vmatpush2.bf16.msra.mxu0 0
        %2214 = vmatprep.subr.bf16.mxu0 0
        %2215 = vmatpush2.bf16.msra.mxu0 0
        %2216 = vmatprep.subr.bf16.mxu0 0
        %2217 = vmatpush2.bf16.msra.mxu0 0
        %2218 = vmatprep.subr.bf16.mxu0 0
        %2219 = vmatpush2.bf16.msra.mxu0 0
        %2220 = vmatprep.subr.bf16.mxu0 0
        %2221 = vmatpush2.bf16.msra.mxu0 0
        %2222 = vmatprep.subr.bf16.mxu0 0
        %2223 = vmatpush2.bf16.msra.mxu0 0
        %2224 = vmatprep.subr.bf16.mxu0 0
        %2225 = vmatpush2.bf16.msra.mxu0 0
        %2226 = vmatprep.subr.bf16.mxu0 0
        %2227 = vmatpush2.bf16.msra.mxu0 0
        %2228 = vmatprep.mubr.bf16.mxu0 0
        %2229 = vmatmul.mubr.bf16.gmra.mxu0 %v2035
        %v2230 = vpop.f32.mrf.mxu0
        %v2231 = vadd.f32 0.0, %v2230
        %v2232 = vpop.f32.mrf.mxu0
        %v2233 = vadd.f32 0.0, %v2232
        %v2234 = vpop.f32.mrf.mxu0
        %v2235 = vadd.f32 0.0, %v2234
        %v2236 = vpop.f32.mrf.mxu0
        %v2237 = vadd.f32 0.0, %v2236
        %2238 = vdwg.mxu0
        %2239 = vmatprep.subr.bf16.mxu0 0
        %2240 = vmatpush1.bf16.msra.mxu0 %v2171
        %2241 = vmatprep.subr.bf16.mxu0 0
        %2242 = vmatpush1.bf16.msra.mxu0 %v2168
        %2243 = vmatprep.subr.bf16.mxu0 0
        %2244 = vmatpush1.bf16.msra.mxu0 %v2165
        %2245 = vmatprep.subr.bf16.mxu0 0
        %2246 = vmatpush1.bf16.msra.mxu0 %v2162
        %2247 = vmatprep.subr.bf16.mxu0 0
        %2248 = vmatpush1.bf16.msra.mxu0 %v2159
        %2249 = vmatprep.subr.bf16.mxu0 0
        %2250 = vmatpush1.bf16.msra.mxu0 %v2156
        %2251 = vmatprep.subr.bf16.mxu0 0
        %2252 = vmatpush1.bf16.msra.mxu0 %v2153
        %2253 = vmatprep.subr.bf16.mxu0 0
        %2254 = vmatpush1.bf16.msra.mxu0 %v2150
        %2255 = vmatprep.subr.bf16.mxu0 0
        %2256 = vmatpush2.bf16.msra.mxu0 0
        %2257 = vmatprep.subr.bf16.mxu0 0
        %2258 = vmatpush2.bf16.msra.mxu0 0
        %2259 = vmatprep.subr.bf16.mxu0 0
        %2260 = vmatpush2.bf16.msra.mxu0 0
        %2261 = vmatprep.subr.bf16.mxu0 0
        %2262 = vmatpush2.bf16.msra.mxu0 0
        %2263 = vmatprep.subr.bf16.mxu0 0
        %2264 = vmatpush2.bf16.msra.mxu0 0
        %2265 = vmatprep.subr.bf16.mxu0 0
        %2266 = vmatpush2.bf16.msra.mxu0 0
        %2267 = vmatprep.subr.bf16.mxu0 0
        %2268 = vmatpush2.bf16.msra.mxu0 0
        %2269 = vmatprep.subr.bf16.mxu0 0
        %2270 = vmatpush2.bf16.msra.mxu0 0
        %2271 = vmatprep.mubr.bf16.mxu0 0
        %2272 = vmatmul.mubr.bf16.gmra.mxu0 %v2035
        %v2273 = vpop.f32.mrf.mxu0
        %v2274 = vadd.f32 0.0, %v2273
        %v2275 = vpop.f32.mrf.mxu0
        %v2276 = vpop.f32.mrf.mxu0
        %v2277 = vadd.f32 0.0, %v2276
        %v2278 = vpop.f32.mrf.mxu0
        %2279 = vdwg.mxu0
        %s2280 = sadd.s32 %s1391, 2
        %s2281 = smul.u32 %s2280, 6
        %s2282 = smul.addr %s2281, 4
        %s2283 = scalar_lea.vmem [#allocation3], %s2282
        %v2284 = vld [vmem:[%s2283] sm:$0xff]
        %v2285 = vld [vmem:[%s2283 + $0x8] sm:$0xf]
        %v2286 = vld [vmem:[%s2283 + $0xc] sm:$0xff]
        %v2287 = vld [vmem:[%s2283 + $0x14] sm:$0xf]
        %v2288 = vunpack.c.l.bf16 %v2284
        %v2289 = vunpack.c.h.bf16 %v2284
        %v2290 = vunpack.c.l.bf16 %v2286
        %v2291 = vunpack.c.h.bf16 %v2286
        %v2292 = vadd.f32 %v2288, %v2231
        %v2293 = vadd.f32 %v2289, %v2233
        %v2294 = vadd.f32 %v2290, %v2235
        %v2295 = vadd.f32 %v2291, %v2237
        %v2296 = vxor.u32 %v2292, 2147483648
        %v2297 = vxor.u32 %v2293, 2147483648
        %v2298 = vxor.u32 %v2294, 2147483648
        %v2299 = vxor.u32 %v2295, 2147483648
        %v2300 = vmul.f32 %v2296, 1.442695
        %v2301 = vpow.pop %v2300
        %v2302 = vmul.f32 %v2297, 1.442695
        %v2303 = vpow.pop %v2302
        %v2304 = vmul.f32 %v2298, 1.442695
        %v2305 = vpow.pop %v2304
        %v2306 = vmul.f32 %v2299, 1.442695
        %v2307 = vpow.pop %v2306
        %v2308 = vadd.f32 %v2301, 1.0
        %v2309 = vadd.f32 %v2303, 1.0
        %v2310 = vadd.f32 %v2305, 1.0
        %v2311 = vadd.f32 %v2307, 1.0
        %v2312 = vrcp.pop %v2308
        %v2313 = vmul.f32 1.0, %v2312
        %v2314 = vrcp.pop %v2309
        %v2315 = vmul.f32 1.0, %v2314
        %v2316 = vrcp.pop %v2310
        %v2317 = vmul.f32 1.0, %v2316
        %v2318 = vrcp.pop %v2311
        %v2319 = vmul.f32 1.0, %v2318
        %v2320 = vadd.f32 %v2274, %v914
        %v2321 = vadd.f32 %v2277, %v914
        %v2322 = vmul.f32 %v2313, %v2320
        %v2323 = vmul.f32 %v2317, %v2321
        %v2324 = vunpack.c.l.bf16 %v2285
        %v2325 = vunpack.c.l.bf16 %v2287
        %v2326 = vadd.f32 %v2324, %v2322
        %v2327 = vadd.f32 %v2325, %v2323
        %v2328 = vtanh.pop %v2326
        %v2329 = vtanh.pop %v2327
        %v2330 = vsub.f32 1.0, %v2315
        %v2331 = vsub.f32 1.0, %v2319
        %v2332 = vmul.f32 %v2330, %v2328
        %v2333 = vmul.f32 %v2331, %v2329
        %v2334 = vmul.f32 %v2315, %v2033
        %v2335 = vmul.f32 %v2319, %v2034
        %v2336 = vadd.f32 %v2332, %v2334
        %v2337 = vadd.f32 %v2333, %v2335
        %2338 = vst [vmem:[#allocation2] sm:$0xff] %v2336
        %2339 = vst [vmem:[#allocation2 + $0x8] sm:$0xff] %v2337
        %v2340 = vpack.c.bf16 %v2337, %v2336
        %s2341 = sadd.s32 %s1699, 2
        %v2343 = vunpack.c.l.b16 %v2340
        %v2344 = vunpack.c.h.b16 %v2340
        %v2345 = vpack.c.b16 %v2343, %v2343
        %v2346 = vpack.c.b16 %v2344, %v2344
        %s2349 = smul.u32 %s2341, 2
        %s2350 = smul.addr %s2349, 4
        %s2351 = scalar_lea.vmem %s413, %s2350
        %2352 = vst [vmem:[%s2351] sm:$0xf] %v2345
        %2353 = vst [vmem:[%s2351 + $0x4] sm:$0xf] %v2346
        %v2354 = vld [vmem:[#allocation2] sm:$0xff]
        %v2355 = vld [vmem:[#allocation2 + $0x8] sm:$0xff]
        %v2356 = vpack.c.bf16 %v2355, %v2354
        %v2357 = vld [vmem:[%s401] sm:$0xff]
        %v2358 = vld [vmem:[%s401 + $0x8] sm:$0xf]
        %v2359 = vld [vmem:[%s401 + $0xc] sm:$0xff]
        %v2360 = vld [vmem:[%s401 + $0x14] sm:$0xf]
        %v2361 = vld [vmem:[%s401 + $0x18] sm:$0xff]
        %v2362 = vld [vmem:[%s401 + $0x20] sm:$0xf]
        %v2363 = vld [vmem:[%s401 + $0x24] sm:$0xff]
        %v2364 = vld [vmem:[%s401 + $0x2c] sm:$0xf]
        %v2365 = vld [vmem:[%s401 + $0x30] sm:$0xff]
        %v2366 = vld [vmem:[%s401 + $0x38] sm:$0xf]
        %v2367 = vld [vmem:[%s401 + $0x3c] sm:$0xff]
        %v2368 = vld [vmem:[%s401 + $0x44] sm:$0xf]
        %v2369 = vld [vmem:[%s401 + $0x48] sm:$0xff]
        %v2370 = vld [vmem:[%s401 + $0x50] sm:$0xf]
        %v2371 = vld [vmem:[%s401 + $0x54] sm:$0xff]
        %v2372 = vld [vmem:[%s401 + $0x5c] sm:$0xf]
        %v2373 = vld [vmem:[%s401 + $0x60] sm:$0xff]
        %v2374 = vld [vmem:[%s401 + $0x68] sm:$0xf]
        %v2375 = vld [vmem:[%s401 + $0x6c] sm:$0xff]
        %v2376 = vld [vmem:[%s401 + $0x74] sm:$0xf]
        %v2377 = vld [vmem:[%s401 + $0x78] sm:$0xff]
        %v2378 = vld [vmem:[%s401 + $0x80] sm:$0xf]
        %v2379 = vld [vmem:[%s401 + $0x84] sm:$0xff]
        %v2380 = vld [vmem:[%s401 + $0x8c] sm:$0xf]
        %v2381 = vld [vmem:[%s401 + $0x90] sm:$0xff]
        %v2382 = vld [vmem:[%s401 + $0x98] sm:$0xf]
        %v2383 = vld [vmem:[%s401 + $0x9c] sm:$0xff]
        %v2384 = vld [vmem:[%s401 + $0xa4] sm:$0xf]
        %v2385 = vld [vmem:[%s401 + $0xa8] sm:$0xff]
        %v2386 = vld [vmem:[%s401 + $0xb0] sm:$0xf]
        %v2387 = vld [vmem:[%s401 + $0xb4] sm:$0xff]
        %v2388 = vld [vmem:[%s401 + $0xbc] sm:$0xf]
        %v2421 = vunpack.c.l.b16 %v2357
        %v2422 = vunpack.c.h.b16 %v2357
        %v2423 = vunpack.c.l.b16 %v2358
        %v2424 = vunpack.c.l.b16 %v2359
        %v2425 = vunpack.c.h.b16 %v2359
        %v2426 = vunpack.c.l.b16 %v2360
        %v2427 = vunpack.c.l.b16 %v2361
        %v2428 = vunpack.c.h.b16 %v2361
        %v2429 = vunpack.c.l.b16 %v2362
        %v2430 = vunpack.c.l.b16 %v2363
        %v2431 = vunpack.c.h.b16 %v2363
        %v2432 = vunpack.c.l.b16 %v2364
        %v2433 = vunpack.c.l.b16 %v2365
        %v2434 = vunpack.c.h.b16 %v2365
        %v2435 = vunpack.c.l.b16 %v2366
        %v2436 = vunpack.c.l.b16 %v2367
        %v2437 = vunpack.c.h.b16 %v2367
        %v2438 = vunpack.c.l.b16 %v2368
        %v2439 = vunpack.c.l.b16 %v2369
        %v2440 = vunpack.c.h.b16 %v2369
        %v2441 = vunpack.c.l.b16 %v2370
        %v2442 = vunpack.c.l.b16 %v2371
        %v2443 = vunpack.c.h.b16 %v2371
        %v2444 = vunpack.c.l.b16 %v2372
        %v2445 = vunpack.c.l.b16 %v2373
        %v2446 = vunpack.c.h.b16 %v2373
        %v2447 = vunpack.c.l.b16 %v2374
        %v2448 = vunpack.c.l.b16 %v2375
        %v2449 = vunpack.c.h.b16 %v2375
        %v2450 = vunpack.c.l.b16 %v2376
        %v2451 = vunpack.c.l.b16 %v2377
        %v2452 = vunpack.c.h.b16 %v2377
        %v2453 = vunpack.c.l.b16 %v2378
        %v2454 = vunpack.c.l.b16 %v2379
        %v2455 = vunpack.c.h.b16 %v2379
        %v2456 = vunpack.c.l.b16 %v2380
        %v2457 = vunpack.c.l.b16 %v2381
        %v2458 = vunpack.c.h.b16 %v2381
        %v2459 = vunpack.c.l.b16 %v2382
        %v2460 = vunpack.c.l.b16 %v2383
        %v2461 = vunpack.c.h.b16 %v2383
        %v2462 = vunpack.c.l.b16 %v2384
        %v2463 = vunpack.c.l.b16 %v2385
        %v2464 = vunpack.c.h.b16 %v2385
        %v2465 = vunpack.c.l.b16 %v2386
        %v2466 = vunpack.c.l.b16 %v2387
        %v2467 = vunpack.c.h.b16 %v2387
        %v2468 = vunpack.c.l.b16 %v2388
        %v2469 = vpack.c.b16 %v2424, %v2421
        %v2470 = vpack.c.b16 %v2425, %v2422
        %v2471 = vpack.c.b16 %v2426, %v2423
        %v2472 = vpack.c.b16 %v2430, %v2427
        %v2473 = vpack.c.b16 %v2431, %v2428
        %v2474 = vpack.c.b16 %v2432, %v2429
        %v2475 = vpack.c.b16 %v2436, %v2433
        %v2476 = vpack.c.b16 %v2437, %v2434
        %v2477 = vpack.c.b16 %v2438, %v2435
        %v2478 = vpack.c.b16 %v2442, %v2439
        %v2479 = vpack.c.b16 %v2443, %v2440
        %v2480 = vpack.c.b16 %v2444, %v2441
        %v2481 = vpack.c.b16 %v2448, %v2445
        %v2482 = vpack.c.b16 %v2449, %v2446
        %v2483 = vpack.c.b16 %v2450, %v2447
        %v2484 = vpack.c.b16 %v2454, %v2451
        %v2485 = vpack.c.b16 %v2455, %v2452
        %v2486 = vpack.c.b16 %v2456, %v2453
        %v2487 = vpack.c.b16 %v2460, %v2457
        %v2488 = vpack.c.b16 %v2461, %v2458
        %v2489 = vpack.c.b16 %v2462, %v2459
        %v2490 = vpack.c.b16 %v2466, %v2463
        %v2491 = vpack.c.b16 %v2467, %v2464
        %v2492 = vpack.c.b16 %v2468, %v2465
        %2517 = vmatprep.subr.bf16.mxu0 %v2491
        %2518 = vmatpush1.bf16.msra.mxu0 %v2490
        %2519 = vmatprep.subr.bf16.mxu0 %v2488
        %2520 = vmatpush1.bf16.msra.mxu0 %v2487
        %2521 = vmatprep.subr.bf16.mxu0 %v2485
        %2522 = vmatpush1.bf16.msra.mxu0 %v2484
        %2523 = vmatprep.subr.bf16.mxu0 %v2482
        %2524 = vmatpush1.bf16.msra.mxu0 %v2481
        %2525 = vmatprep.subr.bf16.mxu0 %v2479
        %2526 = vmatpush1.bf16.msra.mxu0 %v2478
        %2527 = vmatprep.subr.bf16.mxu0 %v2476
        %2528 = vmatpush1.bf16.msra.mxu0 %v2475
        %2529 = vmatprep.subr.bf16.mxu0 %v2473
        %2530 = vmatpush1.bf16.msra.mxu0 %v2472
        %2531 = vmatprep.subr.bf16.mxu0 %v2470
        %2532 = vmatpush1.bf16.msra.mxu0 %v2469
        %2533 = vmatprep.subr.bf16.mxu0 0
        %2534 = vmatpush2.bf16.msra.mxu0 0
        %2535 = vmatprep.subr.bf16.mxu0 0
        %2536 = vmatpush2.bf16.msra.mxu0 0
        %2537 = vmatprep.subr.bf16.mxu0 0
        %2538 = vmatpush2.bf16.msra.mxu0 0
        %2539 = vmatprep.subr.bf16.mxu0 0
        %2540 = vmatpush2.bf16.msra.mxu0 0
        %2541 = vmatprep.subr.bf16.mxu0 0
        %2542 = vmatpush2.bf16.msra.mxu0 0
        %2543 = vmatprep.subr.bf16.mxu0 0
        %2544 = vmatpush2.bf16.msra.mxu0 0
        %2545 = vmatprep.subr.bf16.mxu0 0
        %2546 = vmatpush2.bf16.msra.mxu0 0
        %2547 = vmatprep.subr.bf16.mxu0 0
        %2548 = vmatpush2.bf16.msra.mxu0 0
        %2549 = vmatprep.mubr.bf16.mxu0 0
        %2550 = vmatmul.mubr.bf16.gmra.mxu0 %v2356
        %v2551 = vpop.f32.mrf.mxu0
        %v2552 = vadd.f32 0.0, %v2551
        %v2553 = vpop.f32.mrf.mxu0
        %v2554 = vadd.f32 0.0, %v2553
        %v2555 = vpop.f32.mrf.mxu0
        %v2556 = vadd.f32 0.0, %v2555
        %v2557 = vpop.f32.mrf.mxu0
        %v2558 = vadd.f32 0.0, %v2557
        %2559 = vdwg.mxu0
        %2560 = vmatprep.subr.bf16.mxu0 0
        %2561 = vmatpush1.bf16.msra.mxu0 %v2492
        %2562 = vmatprep.subr.bf16.mxu0 0
        %2563 = vmatpush1.bf16.msra.mxu0 %v2489
        %2564 = vmatprep.subr.bf16.mxu0 0
        %2565 = vmatpush1.bf16.msra.mxu0 %v2486
        %2566 = vmatprep.subr.bf16.mxu0 0
        %2567 = vmatpush1.bf16.msra.mxu0 %v2483
        %2568 = vmatprep.subr.bf16.mxu0 0
        %2569 = vmatpush1.bf16.msra.mxu0 %v2480
        %2570 = vmatprep.subr.bf16.mxu0 0
        %2571 = vmatpush1.bf16.msra.mxu0 %v2477
        %2572 = vmatprep.subr.bf16.mxu0 0
        %2573 = vmatpush1.bf16.msra.mxu0 %v2474
        %2574 = vmatprep.subr.bf16.mxu0 0
        %2575 = vmatpush1.bf16.msra.mxu0 %v2471
        %2576 = vmatprep.subr.bf16.mxu0 0
        %2577 = vmatpush2.bf16.msra.mxu0 0
        %2578 = vmatprep.subr.bf16.mxu0 0
        %2579 = vmatpush2.bf16.msra.mxu0 0
        %2580 = vmatprep.subr.bf16.mxu0 0
        %2581 = vmatpush2.bf16.msra.mxu0 0
        %2582 = vmatprep.subr.bf16.mxu0 0
        %2583 = vmatpush2.bf16.msra.mxu0 0
        %2584 = vmatprep.subr.bf16.mxu0 0
        %2585 = vmatpush2.bf16.msra.mxu0 0
        %2586 = vmatprep.subr.bf16.mxu0 0
        %2587 = vmatpush2.bf16.msra.mxu0 0
        %2588 = vmatprep.subr.bf16.mxu0 0
        %2589 = vmatpush2.bf16.msra.mxu0 0
        %2590 = vmatprep.subr.bf16.mxu0 0
        %2591 = vmatpush2.bf16.msra.mxu0 0
        %2592 = vmatprep.mubr.bf16.mxu0 0
        %2593 = vmatmul.mubr.bf16.gmra.mxu0 %v2356
        %v2594 = vpop.f32.mrf.mxu0
        %v2595 = vadd.f32 0.0, %v2594
        %v2596 = vpop.f32.mrf.mxu0
        %v2597 = vpop.f32.mrf.mxu0
        %v2598 = vadd.f32 0.0, %v2597
        %v2599 = vpop.f32.mrf.mxu0
        %2600 = vdwg.mxu0
        %s2601 = sadd.s32 %s1391, 3
        %s2602 = smul.u32 %s2601, 6
        %s2603 = smul.addr %s2602, 4
        %s2604 = scalar_lea.vmem [#allocation3], %s2603
        %v2605 = vld [vmem:[%s2604] sm:$0xff]
        %v2606 = vld [vmem:[%s2604 + $0x8] sm:$0xf]
        %v2607 = vld [vmem:[%s2604 + $0xc] sm:$0xff]
        %v2608 = vld [vmem:[%s2604 + $0x14] sm:$0xf]
        %v2609 = vunpack.c.l.bf16 %v2605
        %v2610 = vunpack.c.h.bf16 %v2605
        %v2611 = vunpack.c.l.bf16 %v2607
        %v2612 = vunpack.c.h.bf16 %v2607
        %v2613 = vadd.f32 %v2609, %v2552
        %v2614 = vadd.f32 %v2610, %v2554
        %v2615 = vadd.f32 %v2611, %v2556
        %v2616 = vadd.f32 %v2612, %v2558
        %v2617 = vxor.u32 %v2613, 2147483648
        %v2618 = vxor.u32 %v2614, 2147483648
        %v2619 = vxor.u32 %v2615, 2147483648
        %v2620 = vxor.u32 %v2616, 2147483648
        %v2621 = vmul.f32 %v2617, 1.442695
        %v2622 = vpow.pop %v2621
        %v2623 = vmul.f32 %v2618, 1.442695
        %v2624 = vpow.pop %v2623
        %v2625 = vmul.f32 %v2619, 1.442695
        %v2626 = vpow.pop %v2625
        %v2627 = vmul.f32 %v2620, 1.442695
        %v2628 = vpow.pop %v2627
        %v2629 = vadd.f32 %v2622, 1.0
        %v2630 = vadd.f32 %v2624, 1.0
        %v2631 = vadd.f32 %v2626, 1.0
        %v2632 = vadd.f32 %v2628, 1.0
        %v2633 = vrcp.pop %v2629
        %v2634 = vmul.f32 1.0, %v2633
        %v2635 = vrcp.pop %v2630
        %v2636 = vmul.f32 1.0, %v2635
        %v2637 = vrcp.pop %v2631
        %v2638 = vmul.f32 1.0, %v2637
        %v2639 = vrcp.pop %v2632
        %v2640 = vmul.f32 1.0, %v2639
        %v2641 = vadd.f32 %v2595, %v914
        %v2642 = vadd.f32 %v2598, %v914
        %v2643 = vmul.f32 %v2634, %v2641
        %v2644 = vmul.f32 %v2638, %v2642
        %v2645 = vunpack.c.l.bf16 %v2606
        %v2646 = vunpack.c.l.bf16 %v2608
        %v2647 = vadd.f32 %v2645, %v2643
        %v2648 = vadd.f32 %v2646, %v2644
        %v2649 = vtanh.pop %v2647
        %v2650 = vtanh.pop %v2648
        %v2651 = vsub.f32 1.0, %v2636
        %v2652 = vsub.f32 1.0, %v2640
        %v2653 = vmul.f32 %v2651, %v2649
        %v2654 = vmul.f32 %v2652, %v2650
        %v2655 = vmul.f32 %v2636, %v2354
        %v2656 = vmul.f32 %v2640, %v2355
        %v2657 = vadd.f32 %v2653, %v2655
        %v2658 = vadd.f32 %v2654, %v2656
        %2659 = vst [vmem:[#allocation2] sm:$0xff] %v2657
        %2660 = vst [vmem:[#allocation2 + $0x8] sm:$0xff] %v2658
        %v2661 = vpack.c.bf16 %v2658, %v2657
        %s2662 = sadd.s32 %s1699, 3
        %v2664 = vunpack.c.l.b16 %v2661
        %v2665 = vunpack.c.h.b16 %v2661
        %v2666 = vpack.c.b16 %v2664, %v2664
        %v2667 = vpack.c.b16 %v2665, %v2665
        %s2670 = smul.u32 %s2662, 2
        %s2671 = smul.addr %s2670, 4
        %s2672 = scalar_lea.vmem %s413, %s2671
        %2673 = vst [vmem:[%s2672] sm:$0xf] %v2666
        %2674 = vst [vmem:[%s2672 + $0x4] sm:$0xf] %v2667
      $region53: #{encoder_rnn_forward.1} parent=43 // loop_footer
        %s921 = sadd.s32 1, %s917
      $region54: #{encoder_rnn_forward.1} parent=43 // loop_footer_branch
        %916 = sbr.rel target = $region50
      $region55: #{encoder_rnn_forward.1} parent=43 // loop_exit
        _
      %v2675 = vld [vmem:[#allocation2] sm:$0xff]
      %v2676 = vld [vmem:[#allocation2 + $0x8] sm:$0xff]
      %2677 = vst [vmem:[%s423] sm:$0xff] %v2675
      %2678 = vst [vmem:[%s423 + $0x8] sm:$0xff] %v2676
      %s2679 = smul.u32 2, %s23
      %p2680 = scmp.lt.s32.totalorder %s2679, 1
      %s2681 = scalar_select %p2680, %s2679, 1
      %s2682 = smul.addr %s2681, 4
      %s2683 = scalar_lea.vmem %s6, %s2682
      %s2684 = smul.u32 2, %s23
      %p2685 = scmp.lt.s32.totalorder %s24, 1
      %s2686 = scalar_select %p2685, %s24, 1
      %p2687 = scmp.lt.s32.totalorder %s2684, 1
      %s2688 = scalar_select %p2687, %s2684, 1
      %s2689 = smul.addr %s2686, 2
      %s2690 = sadd.s32 %s2688, %s2689
      %s2691 = smul.addr %s2690, 8
      %s2692 = scalar_lea.vmem %s7, %s2691
      // Predicated region
      $region60: #{encoder_rnn_forward.1} parent=43 // pred_check
        %p2693 = pneg %p207
      $region61: #{encoder_rnn_forward.1} parent=43 // pred_check_branch
        %2695 = sbr.rel (%p2693) target = $region63
      $region62: #{encoder_rnn_forward.1} parent=43 // pred_region
        %s2696 = smul.u32 2, %s23
      $region63: #{encoder_rnn_forward.1} parent=43 // pred_fallthru
        _
      // Predicated region
      $region64: #{encoder_rnn_forward.1} parent=43 // pred_check
        %p2697 = pneg %p235
      $region65: #{encoder_rnn_forward.1} parent=43 // pred_check_branch
        %2699 = sbr.rel (%p2697) target = $region67
      $region66: #{encoder_rnn_forward.1} parent=43 // pred_region
        %s2700 = smul.u32 2, %s23
      $region67: #{encoder_rnn_forward.1} parent=43 // pred_fallthru
        _
      // Predicated region
      $region68: #{encoder_rnn_forward.1} parent=43 // pred_check
        %p2701 = pneg %p207
      $region69: #{encoder_rnn_forward.1} parent=43 // pred_check_branch
        %2703 = sbr.rel (%p2701) target = $region71
      $region70: #{encoder_rnn_forward.1} parent=43 // pred_region
        %s2704 = smul.u32 2, %s23
        %p2705 = scmp.lt.s32.totalorder %s2704, 1
        %s2706 = scalar_select %p2705, %s2704, 1
        %s2707 = smul.addr %s2706, 4
        %s2708 = scalar_lea.vmem %s6, %s2707
      $region71: #{encoder_rnn_forward.1} parent=43 // pred_fallthru
        _
    $region44: #{encoder_rnn_forward.1} parent=5 // pred_fallthru
      _
    %p2709 = scmp.le.s32.totalorder 2, %s14
    // Predicated region
    $region72: #{encoder_rnn_forward.1} parent=5 // pred_check
      %p2710 = pneg %p2709
    $region73: #{encoder_rnn_forward.1} parent=5 // pred_check_branch
      %2712 = sbr.rel (%p2710) target = $region75
    $region74: #{encoder_rnn_forward.1} parent=5 // pred_region
      %s2713 = ssub.s32 %s14, 2
      // Predicated region
      $region76: #{encoder_rnn_forward.1} parent=74 // pred_check
        %p2714 = pneg %p241
      $region77: #{encoder_rnn_forward.1} parent=74 // pred_check_branch
        %2716 = sbr.rel (%p2714) target = $region79
      $region78: #{encoder_rnn_forward.1} parent=74 // pred_region
        %s2717 = smul.u32 2, %s25
        %p2718 = scmp.lt.s32.totalorder %s26, 1
        %s2719 = scalar_select %p2718, %s26, 1
        %p2720 = scmp.lt.s32.totalorder %s2717, 1
        %s2721 = scalar_select %p2720, %s2717, 1
        %s2722 = smul.addr %s2719, 2
        %s2723 = sadd.s32 %s2721, %s2722
        %s2724 = smul.addr %s2723, 8
        %s2725 = scalar_lea.vmem %s7, %s2724
      $region79: #{encoder_rnn_forward.1} parent=74 // pred_fallthru
        _
    $region75: #{encoder_rnn_forward.1} parent=5 // pred_fallthru
      _
  $region6: #{encoder_rnn_forward.1} parent=0 // loop_footer
    %s18 = sadd.s32 1, %s14
  $region7: #{encoder_rnn_forward.1} parent=0 // loop_footer_branch
    %13 = sbr.rel target = $region3
  $region8: #{encoder_rnn_forward.1} parent=0 // loop_exit
    _

</llo_original>
